<compile_context>
chip_gen: v7x
topology: tpu7x:2x2x1
jax: 0.10.0
libtpu: 0.0.40
codegen_flags: <defaults>
</compile_context>

<pallas_src>
import jax
import jax.numpy as jnp
from jax.experimental import pallas as pl
from jax.experimental.pallas import tpu as pltpu

LN_EPS = 1e-5                      # torch.nn.LayerNorm default
_SQRT_HALF = 0.7071067811865476


# ---------------------------------------------------------------------------
# in-kernel math
# ---------------------------------------------------------------------------
def _erf_poly(x):
    # Abramowitz & Stegun 7.1.26 (|err| ~ 1.5e-7); reciprocal on the EUP (approx vrcp,
    # ~2^-12 rel err, far inside the 1e-3 test tolerance).
    a1, a2, a3, a4, a5 = 0.254829592, -0.284496736, 1.421413741, -1.453152027, 1.061405429
    p = 0.3275911
    ax = jnp.abs(x)
    t = pl.reciprocal(1.0 + p * ax, approx=True)
    poly = ((((a5 * t + a4) * t + a3) * t + a2) * t + a1) * t
    y = 1.0 - poly * jnp.exp(-ax * ax)
    return jnp.where(x >= 0.0, y, -y)


def _gelu(x):
    # torch.nn.GELU() default: 0.5 * x * (1 + erf(x / sqrt(2)))
    return 0.5 * x * (1.0 + _erf_poly(x * _SQRT_HALF))


def _ln_plain(x):
    # LayerNorm WITHOUT affine (gamma/beta are folded into the following Linear).
    m = jnp.mean(x, axis=-1, keepdims=True)
    v = jnp.mean((x - m) ** 2, axis=-1, keepdims=True)
    return (x - m) * jax.lax.rsqrt(v + LN_EPS)


# ---------------------------------------------------------------------------
# fused kernel: ally MLP + enemy MLP + resultant reduction + q_move assembly
# ---------------------------------------------------------------------------
def _make_kernel(T, n_allies, n_enemies, inv_da, inv_de):
    A, E = n_allies, n_enemies

    def kernel(obown_ref, a_ent_ref, e_ent_ref, wts_ref,
               aw1b_ref, aw1e_ref, aw2_ref, avec_ref,
               ew1b_ref, ew1e_ref, ew2_ref, evec_ref,
               o_ref):
        obown = obown_ref[...]                               # (T, H+OWN)
        # LN-1 stats of the (never-materialized) concat, base part (entity-invariant)
        sum_base = jnp.sum(obown, -1, keepdims=True)         # (T, 1)
        ssq_base = jnp.sum(obown * obown, -1, keepdims=True)
        wts = wts_ref[...]                                   # (T, 2A+2E+2)

        def branch(ent_ref, w1b_ref, w1e_ref, w2_ref, vec_ref, cw, sw, n_ent, inv_d):
            vec = vec_ref[...]                               # (8, fc) packed vectors
            rs1, b1, b2, w3 = vec[0:1], vec[1:2], vec[2:3], vec[3:4]
            b3 = vec[4:5, 0:1]                               # (1, 1)

            # entity-independent part of the first Linear: hoisted, one matmul per branch
            p_base = jnp.dot(obown, w1b_ref[...], preferred_element_type=jnp.float32)

            # stack all entities of this branch along the row (sublane) axis:
            # one big (n_ent*T, F) problem instead of n_ent tiny matmuls.
            ent2 = jnp.concatenate([ent_ref[e] for e in range(n_ent)], axis=0)
            sb = jnp.concatenate([sum_base] * n_ent, axis=0)
            sq = jnp.concatenate([ssq_base] * n_ent, axis=0)
            pb = jnp.concatenate([p_base] * n_ent, axis=0)

            mean = (sb + jnp.sum(ent2, -1, keepdims=True)) * inv_d
            msq = (sq + jnp.sum(ent2 * ent2, -1, keepdims=True)) * inv_d
            var = jnp.maximum(msq - mean * mean, 0.0)        # guard one-pass cancellation
            rstd = jax.lax.rsqrt(var + LN_EPS)

            # LayerNorm-1 affine folded into gamma-prescaled W1 blocks:
            #   LN1(x) @ W1 + b1 = rstd*(x @ W1g) - rstd*mean*rs1 + b1f
            h = (rstd * (pb + jnp.dot(ent2, w1e_ref[...],
                                      preferred_element_type=jnp.float32))
                 - (rstd * mean) * rs1 + b1)
            h = _gelu(h)
            h = _ln_plain(h)                                 # LN2 affine folded into W2/b2
            h = jnp.dot(h, w2_ref[...], preferred_element_type=jnp.float32) + b2
            h = _gelu(h)
            h = _ln_plain(h)                                 # LN3 affine folded into w3/b3
            # final Linear(fc -> 1) as a VPU/XLU lane reduce (no N=1 MXU matmul)
            imp = jnp.sum(h * w3, -1, keepdims=True) + b3    # (n_ent*T, 1)

            # sight/cos/sin-weighted reduction over entities (tiny (T,1) mul-adds)
            rx = jnp.zeros_like(sum_base)
            ry = jnp.zeros_like(sum_base)
            for e in range(n_ent):
                ie = imp[e * T:(e + 1) * T, :]
                rx = rx + ie * cw[:, e:e + 1]
                ry = ry + ie * sw[:, e:e + 1]
            return rx, ry

        a_cw = wts[:, 0:A]
        a_sw = wts[:, A:2 * A]
        e_cw = wts[:, 2 * A:2 * A + E]
        e_sw = wts[:, 2 * A + E:2 * A + 2 * E]
        qm = wts[:, 2 * A + 2 * E:2 * A + 2 * E + 2]

        arx, ary = branch(a_ent_ref, aw1b_ref, aw1e_ref, aw2_ref, avec_ref,
                          a_cw, a_sw, A, inv_da)
        erx, ery = branch(e_ent_ref, ew1b_ref, ew1e_ref, ew2_ref, evec_ref,
                          e_cw, e_sw, E, inv_de)
        rx = arx + erx
        ry = ary + ery

        qm0 = qm[:, 0:1]
        qm1 = qm[:, 1:2]
        # q_move = q_move_mean[:, :, [0,0,1,1]] + concat([y, -y, x, -x], -1)
        o_ref[...] = jnp.concatenate([qm0 + ry, qm0 - ry, qm1 + rx, qm1 - rx], axis=-1)

    return kernel


# ---------------------------------------------------------------------------
# parameter folding (a handful of tiny XLA ops, done per call)
# ---------------------------------------------------------------------------
def _round_up(x, m):
    return ((x + m - 1) // m) * m


def _prep_params(p, hidden_dim, own_feats_dim):
    """Fold all three LayerNorm affines into the adjacent Linear weights and pack
    the (1, fc) vectors (rs1, b1, b2, w3, b3) into a single (8, fc) array."""
    fc = p["w1"].shape[1]
    HO = hidden_dim + own_feats_dim
    w1g = p["w1"] * p["g1"].T                      # LN1 gamma folded into W1 rows, (D, fc)
    rs1 = jnp.sum(w1g, axis=0, keepdims=True)      # == g1 @ W1
    b1 = p["be1"] @ p["w1"] + p["b1"]              # (1, fc)
    w2g = p["w2"] * p["g2"].T                      # LN2 gamma folded into W2 rows
    b2 = p["be2"] @ p["w2"] + p["b2"]              # (1, fc)
    w3g = p["w3"].T * p["g3"]                      # LN3 gamma folded into w3, (1, fc)
    b3 = p["be3"] @ p["w3"] + p["b3"]              # (1, 1)
    vec = jnp.zeros((8, fc), jnp.float32)
    vec = vec.at[0].set(rs1[0]).at[1].set(b1[0]).at[2].set(b2[0]).at[3].set(w3g[0])
    vec = vec.at[4].set(jnp.full((fc,), b3[0, 0], jnp.float32))
    return {"w1_base": w1g[:HO], "w1_ent": w1g[HO:], "w2": w2g, "vec": vec}


# ---------------------------------------------------------------------------
# forward pass (thin JAX glue; all heavy work in the single Pallas kernel)
# ---------------------------------------------------------------------------
def impact_computer_forward(ob_rep, node_feat, ally_in_sight, enemy_in_sight,
                            ally_cos, enemy_cos, ally_sin, enemy_sin,
                            ally_distance, enemy_distance, q_move_mean,
                            ally_params, enemy_params,
                            n_agents, n_enemies, hidden_dim, own_feats_dim,
                            tile_rows=512):
    # ally_distance / enemy_distance are accepted but unused, exactly like the torch forward.
    del ally_distance, enemy_distance

    ob = ob_rep.reshape(-1, n_agents, hidden_dim)
    bs = ob.shape[0]
    n_allies = n_agents - 1
    BA = bs * n_agents

    own = node_feat[:, :, 0].reshape(bs, n_agents, own_feats_dim)
    ally_feats = node_feat[:, :, 1:n_agents, :]              # (bs, na, A, AF)
    enemy_feats = node_feat[:, :, n_agents:, :]              # (bs, na, E, EF)
    af = ally_feats.shape[-1]
    ef = enemy_feats.shape[-1]

    # ob | own consolidated into one row-wise ref (one DMA / VMEM window, one lane reduce)
    obown = jnp.concatenate([ob.reshape(BA, hidden_dim),
                             own.reshape(BA, own_feats_dim)], axis=-1)
    # Entity-major layout so the kernel can stack entities along rows with cheap sublane
    # concats (costs one XLA transpose of the small feature tensors up front).
    a_ent = jnp.transpose(ally_feats, (2, 0, 1, 3)).reshape(n_allies, BA, af)
    e_ent = jnp.transpose(enemy_feats, (2, 0, 1, 3)).reshape(n_enemies, BA, ef)
    # All narrow per-row vectors consolidated into one ref.
    wts = jnp.concatenate([
        (ally_cos * ally_in_sight)[..., 0].reshape(BA, n_allies),
        (ally_sin * ally_in_sight)[..., 0].reshape(BA, n_allies),
        (enemy_cos * enemy_in_sight)[..., 0].reshape(BA, n_enemies),
        (enemy_sin * enemy_in_sight)[..., 0].reshape(BA, n_enemies),
        q_move_mean.reshape(BA, 2)], axis=-1)
    n_w = 2 * n_allies + 2 * n_enemies + 2

    # Tile: multiple of 8, capped so the grid has >= 2 steps when possible (row axis is
    # "parallel" -> both of v7x's TensorCores get work; also enables pipelining overlap).
    T = min(tile_rows, _round_up(-(-BA // 2), 8))
    BA_pad = _round_up(BA, T)
    if BA_pad != BA:
        pad = BA_pad - BA
        obown = jnp.pad(obown, ((0, pad), (0, 0)))
        wts = jnp.pad(wts, ((0, pad), (0, 0)))
        a_ent = jnp.pad(a_ent, ((0, 0), (0, pad), (0, 0)))
        e_ent = jnp.pad(e_ent, ((0, 0), (0, pad), (0, 0)))

    ap = _prep_params(ally_params, hidden_dim, own_feats_dim)
    ep = _prep_params(enemy_params, hidden_dim, own_feats_dim)
    ally_par = (ap["w1_base"], ap["w1_ent"], ap["w2"], ap["vec"])
    enemy_par = (ep["w1_base"], ep["w1_ent"], ep["w2"], ep["vec"])

    kernel = _make_kernel(T, n_allies, n_enemies,
                          1.0 / (hidden_dim + own_feats_dim + af),
                          1.0 / (hidden_dim + own_feats_dim + ef))

    def row2(n):
        return pl.BlockSpec((T, n), lambda i: (i, 0))

    def full(a):
        return pl.BlockSpec(a.shape, lambda i: (0,) * a.ndim)

    data_specs = [row2(hidden_dim + own_feats_dim),
                  pl.BlockSpec((n_allies, T, af), lambda i: (0, i, 0)),
                  pl.BlockSpec((n_enemies, T, ef), lambda i: (0, i, 0)),
                  row2(n_w)]
    param_specs = [full(a) for a in ally_par + enemy_par]

    out = pl.pallas_call(
        kernel,
        out_shape=jax.ShapeDtypeStruct((BA_pad, 4), jnp.float32),
        grid=(BA_pad // T,),
        in_specs=data_specs + param_specs,
        out_specs=pl.BlockSpec((T, 4), lambda i: (i, 0)),
        compiler_params=pltpu.CompilerParams(
            dimension_semantics=("parallel",),       # row tiles shard across v7x's 2 TCs
            vmem_limit_bytes=48 * 1024 * 1024),      # > v5e 16 MiB scoped default,
                                                     # < v7x 64 MiB physical VMEM
    )(obown, a_ent, e_ent, wts, *ally_par, *enemy_par)

    # Zero-padded rows produce finite garbage (rstd ~ 1/sqrt(eps)); this slice removes them.
    return out[:BA].reshape(bs, n_agents, 4)
    # TODO(synk): further gain available by lane-packing the fc=64 intermediates to 128
    # lanes (block-diagonal W2 + segmented LN stats); skipped to keep lowering simple.


# ---------------------------------------------------------------------------
# parameter construction (deterministic, mirrors init_/orthogonal_/zeros_)
# ---------------------------------------------------------------------------
def _orthogonal(key, shape, gain):
    rows, cols = shape
    a = jax.random.normal(key, (max(rows, cols), min(rows, cols)), jnp.float32)
    q, r = jnp.linalg.qr(a)
    q = q * jnp.sign(jnp.diagonal(r))
    if rows < cols:
        q = q.T
    return (gain * q[:rows, :cols]).astype(jnp.float32)


def make_mlp_params(key, in_dim, fc_dim):
    k1, k2, k3 = jax.random.split(key, 3)
    relu_gain = jnp.sqrt(2.0)  # nn.init.calculate_gain('relu')
    return {
        "g1": jnp.ones((1, in_dim), jnp.float32), "be1": jnp.zeros((1, in_dim), jnp.float32),
        "w1": _orthogonal(k1, (fc_dim, in_dim), relu_gain).T,    # stored (in, out)
        "b1": jnp.zeros((1, fc_dim), jnp.float32),
        "g2": jnp.ones((1, fc_dim), jnp.float32), "be2": jnp.zeros((1, fc_dim), jnp.float32),
        "w2": _orthogonal(k2, (fc_dim, fc_dim), relu_gain).T,
        "b2": jnp.zeros((1, fc_dim), jnp.float32),
        "g3": jnp.ones((1, fc_dim), jnp.float32), "be3": jnp.zeros((1, fc_dim), jnp.float32),
        "w3": _orthogonal(k3, (1, fc_dim), 0.01).T,              # (fc_dim, 1)
        "b3": jnp.zeros((1, 1), jnp.float32),
    }


# ---------------------------------------------------------------------------
# pure-JAX reference (same math as the torch module, no Pallas) for correctness
# ---------------------------------------------------------------------------
def reference_forward(ob_rep, node_feat, ally_in_sight, enemy_in_sight,
                      ally_cos, enemy_cos, ally_sin, enemy_sin, q_move_mean,
                      ally_params, enemy_params,
                      n_agents, n_enemies, hidden_dim, own_feats_dim):
    def ln(x, g, b):
        m = jnp.mean(x, axis=-1, keepdims=True)
        v = jnp.mean((x - m) ** 2, axis=-1, keepdims=True)
        return (x - m) * jax.lax.rsqrt(v + LN_EPS) * g + b

    def gelu(x):
        return 0.5 * x * (1.0 + jax.scipy.special.erf(x * _SQRT_HALF))

    def mlp(x, p):
        h = ln(x, p["g1"], p["be1"])
        h = gelu(h @ p["w1"] + p["b1"])
        h = ln(h, p["g2"], p["be2"])
        h = gelu(h @ p["w2"] + p["b2"])
        h = ln(h, p["g3"], p["be3"])
        return h @ p["w3"] + p["b3"]

    ob = ob_rep.reshape(-1, n_agents, hidden_dim)
    bs = ob.shape[0]
    A = n_agents - 1
    own = node_feat[:, :, 0].reshape(-1, n_agents, own_feats_dim)
    ally_feats = node_feat[:, :, 1:n_agents, :]
    enemy_feats = node_feat[:, :, n_agents:, :]
    ob_a = jnp.broadcast_to(ob[:, :, None, :], (bs, n_agents, A, hidden_dim))
    ob_e = jnp.broadcast_to(ob[:, :, None, :], (bs, n_agents, n_enemies, hidden_dim))
    own_a = jnp.broadcast_to(own[:, :, None, :], (bs, n_agents, A, own_feats_dim))
    own_e = jnp.broadcast_to(own[:, :, None, :], (bs, n_agents, n_enemies, own_feats_dim))
    ally_inputs = jnp.concatenate([ob_a, own_a, ally_feats], axis=-1)
    enemy_inputs = jnp.concatenate([ob_e, own_e, enemy_feats], axis=-1)
    ally_impacts = mlp(ally_inputs, ally_params)
    enemy_impacts = mlp(enemy_inputs, enemy_params)
    rx = ((ally_impacts * ally_cos * ally_in_sight).sum(2)
          + (enemy_impacts * enemy_cos * enemy_in_sight).sum(2))
    ry = ((ally_impacts * ally_sin * ally_in_sight).sum(2)
          + (enemy_impacts * enemy_sin * enemy_in_sight).sum(2))
    resultant = jnp.concatenate([ry, -ry, rx, -rx], axis=-1)
    return q_move_mean[:, :, jnp.array([0, 0, 1, 1])] + resultant


if __name__ == "__main__":
    bs, n_agents, n_enemies = 2, 4, 5
    own_feats_dim = ally_feats_dim = enemy_feats_dim = 8
    hidden_dim = 32          # total_ob_rep_dim
    fc_dim = 64
    A = n_agents - 1

    key = jax.random.PRNGKey(0)
    ks = jax.random.split(key, 12)

    ob_rep = jax.random.normal(ks[0], (bs, n_agents, hidden_dim), jnp.float32)
    node_feat = jax.random.normal(ks[1], (bs, n_agents, n_agents + n_enemies, own_feats_dim),
                                  jnp.float32)
    ally_in_sight = (jax.random.uniform(ks[2], (bs, n_agents, A, 1)) > 0.3).astype(jnp.float32)
    enemy_in_sight = (jax.random.uniform(ks[3], (bs, n_agents, n_enemies, 1)) > 0.3).astype(jnp.float32)
    ally_theta = jax.random.uniform(ks[4], (bs, n_agents, A, 1), jnp.float32) * 2.0 * jnp.pi
    enemy_theta = jax.random.uniform(ks[5], (bs, n_agents, n_enemies, 1), jnp.float32) * 2.0 * jnp.pi
    ally_cos, ally_sin = jnp.cos(ally_theta), jnp.sin(ally_theta)
    enemy_cos, enemy_sin = jnp.cos(enemy_theta), jnp.sin(enemy_theta)
    ally_distance = jax.random.uniform(ks[6], (bs, n_agents, A, 1), jnp.float32)       # unused
    enemy_distance = jax.random.uniform(ks[7], (bs, n_agents, n_enemies, 1), jnp.float32)  # unused
    q_move_mean = jax.random.normal(ks[8], (bs, n_agents, 2), jnp.float32)

    ally_params = make_mlp_params(ks[9], hidden_dim + own_feats_dim + ally_feats_dim, fc_dim)
    enemy_params = make_mlp_params(ks[10], hidden_dim + own_feats_dim + enemy_feats_dim, fc_dim)

    q_move = impact_computer_forward(
        ob_rep, node_feat, ally_in_sight, enemy_in_sight,
        ally_cos, enemy_cos, ally_sin, enemy_sin,
        ally_distance, enemy_distance, q_move_mean,
        ally_params, enemy_params,
        n_agents, n_enemies, hidden_dim, own_feats_dim)
    q_move = jax.block_until_ready(q_move)

    q_ref = reference_forward(
        ob_rep, node_feat, ally_in_sight, enemy_in_sight,
        ally_cos, enemy_cos, ally_sin, enemy_sin, q_move_mean,
        ally_params, enemy_params,
        n_agents, n_enemies, hidden_dim, own_feats_dim)

    assert q_move.shape == (bs, n_agents, 4)
    assert jnp.allclose(q_move, q_ref, atol=1e-3, rtol=1e-3)
    print("KERNEL_OK")
</pallas_src>

<mosaic_0001>
module attributes {stable_mosaic.version = 11 : i64} {
  func.func @kernel(%arg0: i32, %arg1: memref<8x40xf32, #tpu.memory_space<vmem>>, %arg2: memref<3x8x8xf32, #tpu.memory_space<vmem>>, %arg3: memref<5x8x8xf32, #tpu.memory_space<vmem>>, %arg4: memref<8x18xf32, #tpu.memory_space<vmem>>, %arg5: memref<40x64xf32, #tpu.memory_space<vmem>>, %arg6: memref<8x64xf32, #tpu.memory_space<vmem>>, %arg7: memref<64x64xf32, #tpu.memory_space<vmem>>, %arg8: memref<8x64xf32, #tpu.memory_space<vmem>>, %arg9: memref<40x64xf32, #tpu.memory_space<vmem>>, %arg10: memref<8x64xf32, #tpu.memory_space<vmem>>, %arg11: memref<64x64xf32, #tpu.memory_space<vmem>>, %arg12: memref<8x64xf32, #tpu.memory_space<vmem>>, %arg13: memref<8x4xf32, #tpu.memory_space<vmem>>) attributes {dimension_semantics = [#tpu.dimension_semantics<parallel>], iteration_bounds = array<i64: 1>, scalar_prefetch = 0 : i64, scratch_operands = 0 : i64, tpu.core_type = #tpu.core_type<tc>, window_params = [{transform_indices = @transform_0, window_bounds = array<i64: 8, 40>}, {transform_indices = @transform_1, window_bounds = array<i64: 3, 8, 8>}, {transform_indices = @transform_2, window_bounds = array<i64: 5, 8, 8>}, {transform_indices = @transform_3, window_bounds = array<i64: 8, 18>}, {pipeline_mode = #tpu.pipeline_mode<synchronous>, transform_indices = @transform_4, window_bounds = array<i64: 40, 64>}, {pipeline_mode = #tpu.pipeline_mode<synchronous>, transform_indices = @transform_5, window_bounds = array<i64: 8, 64>}, {pipeline_mode = #tpu.pipeline_mode<synchronous>, transform_indices = @transform_6, window_bounds = array<i64: 64, 64>}, {pipeline_mode = #tpu.pipeline_mode<synchronous>, transform_indices = @transform_7, window_bounds = array<i64: 8, 64>}, {pipeline_mode = #tpu.pipeline_mode<synchronous>, transform_indices = @transform_8, window_bounds = array<i64: 40, 64>}, {pipeline_mode = #tpu.pipeline_mode<synchronous>, transform_indices = @transform_9, window_bounds = array<i64: 8, 64>}, {pipeline_mode = #tpu.pipeline_mode<synchronous>, transform_indices = @transform_10, window_bounds = array<i64: 64, 64>}, {pipeline_mode = #tpu.pipeline_mode<synchronous>, transform_indices = @transform_11, window_bounds = array<i64: 8, 64>}, {transform_indices = @transform_12, window_bounds = array<i64: 8, 4>}]} {
    %c0 = arith.constant 0 : index
    %c0_0 = arith.constant 0 : index
    %0 = vector.load %arg1[%c0, %c0_0] : memref<8x40xf32, #tpu.memory_space<vmem>>, vector<8x40xf32>
    %cst = arith.constant dense<0.000000e+00> : vector<8xf32>
    %1 = vector.multi_reduction <add>, %0, %cst [1] : vector<8x40xf32> to vector<8xf32>
    %2 = vector.shape_cast %1 : vector<8xf32> to vector<8x1xf32>
    %3 = arith.mulf %0, %0 : vector<8x40xf32>
    %cst_1 = arith.constant dense<0.000000e+00> : vector<8xf32>
    %4 = vector.multi_reduction <add>, %3, %cst_1 [1] : vector<8x40xf32> to vector<8xf32>
    %5 = vector.shape_cast %4 : vector<8xf32> to vector<8x1xf32>
    %c0_2 = arith.constant 0 : index
    %c0_3 = arith.constant 0 : index
    %6 = vector.load %arg4[%c0_2, %c0_3] : memref<8x18xf32, #tpu.memory_space<vmem>>, vector<8x18xf32>
    %7 = vector.extract_strided_slice %6 {offsets = [0, 0], sizes = [8, 3], strides = [1, 1]} : vector<8x18xf32> to vector<8x3xf32>
    %8 = vector.extract_strided_slice %6 {offsets = [0, 3], sizes = [8, 3], strides = [1, 1]} : vector<8x18xf32> to vector<8x3xf32>
    %9 = vector.extract_strided_slice %6 {offsets = [0, 6], sizes = [8, 5], strides = [1, 1]} : vector<8x18xf32> to vector<8x5xf32>
    %10 = vector.extract_strided_slice %6 {offsets = [0, 11], sizes = [8, 5], strides = [1, 1]} : vector<8x18xf32> to vector<8x5xf32>
    %11 = vector.extract_strided_slice %6 {offsets = [0, 16], sizes = [8, 2], strides = [1, 1]} : vector<8x18xf32> to vector<8x2xf32>
    %c0_4 = arith.constant 0 : index
    %c0_5 = arith.constant 0 : index
    %12 = vector.load %arg8[%c0_4, %c0_5] : memref<8x64xf32, #tpu.memory_space<vmem>>, vector<8x64xf32>
    %13 = vector.extract_strided_slice %12 {offsets = [0, 0], sizes = [1, 64], strides = [1, 1]} : vector<8x64xf32> to vector<1x64xf32>
    %14 = vector.extract_strided_slice %12 {offsets = [1, 0], sizes = [1, 64], strides = [1, 1]} : vector<8x64xf32> to vector<1x64xf32>
    %15 = vector.extract_strided_slice %12 {offsets = [2, 0], sizes = [1, 64], strides = [1, 1]} : vector<8x64xf32> to vector<1x64xf32>
    %16 = vector.extract_strided_slice %12 {offsets = [3, 0], sizes = [1, 64], strides = [1, 1]} : vector<8x64xf32> to vector<1x64xf32>
    %17 = vector.extract_strided_slice %12 {offsets = [4, 0], sizes = [1, 1], strides = [1, 1]} : vector<8x64xf32> to vector<1x1xf32>
    %c0_6 = arith.constant 0 : index
    %c0_7 = arith.constant 0 : index
    %18 = vector.load %arg5[%c0_6, %c0_7] : memref<40x64xf32, #tpu.memory_space<vmem>>, vector<40x64xf32>
    %cst_8 = arith.constant dense<0.000000e+00> : vector<8x64xf32>
    %19 = tpu.matmul %0, %18, %cst_8 {dimension_numbers = #tpu.dot_dimension_numbers<[1], [0], [0], [1], [0, 0, 1, 1], [], []>} : vector<8x40xf32>, vector<40x64xf32>, vector<8x64xf32> -> vector<8x64xf32>
    %c0_9 = arith.constant 0 : index
    %c0_10 = arith.constant 0 : index
    %c0_11 = arith.constant 0 : index
    %20 = vector.load %arg2[%c0_9, %c0_10, %c0_11] : memref<3x8x8xf32, #tpu.memory_space<vmem>>, vector<1x8x8xf32>
    %21 = vector.shape_cast %20 : vector<1x8x8xf32> to vector<8x8xf32>
    %c1 = arith.constant 1 : index
    %c0_12 = arith.constant 0 : index
    %c0_13 = arith.constant 0 : index
    %22 = vector.load %arg2[%c1, %c0_12, %c0_13] : memref<3x8x8xf32, #tpu.memory_space<vmem>>, vector<1x8x8xf32>
    %23 = vector.shape_cast %22 : vector<1x8x8xf32> to vector<8x8xf32>
    %c2 = arith.constant 2 : index
    %c0_14 = arith.constant 0 : index
    %c0_15 = arith.constant 0 : index
    %24 = vector.load %arg2[%c2, %c0_14, %c0_15] : memref<3x8x8xf32, #tpu.memory_space<vmem>>, vector<1x8x8xf32>
    %25 = vector.shape_cast %24 : vector<1x8x8xf32> to vector<8x8xf32>
    %26 = tpu.concatenate %21, %23, %25 in 0 : vector<8x8xf32>, vector<8x8xf32>, vector<8x8xf32> -> vector<24x8xf32>
    %27 = tpu.concatenate %2, %2, %2 in 0 : vector<8x1xf32>, vector<8x1xf32>, vector<8x1xf32> -> vector<24x1xf32>
    %28 = tpu.concatenate %5, %5, %5 in 0 : vector<8x1xf32>, vector<8x1xf32>, vector<8x1xf32> -> vector<24x1xf32>
    %29 = tpu.concatenate %19, %19, %19 in 0 : vector<8x64xf32>, vector<8x64xf32>, vector<8x64xf32> -> vector<24x64xf32>
    %cst_16 = arith.constant dense<0.000000e+00> : vector<24xf32>
    %30 = vector.multi_reduction <add>, %26, %cst_16 [1] : vector<24x8xf32> to vector<24xf32>
    %31 = vector.shape_cast %30 : vector<24xf32> to vector<24x1xf32>
    %32 = arith.addf %27, %31 : vector<24x1xf32>
    %cst_17 = arith.constant 0.020833334 : f32
    %33 = vector.broadcast %cst_17 : f32 to vector<24x1xf32>
    %34 = arith.mulf %32, %33 : vector<24x1xf32>
    %35 = arith.mulf %26, %26 : vector<24x8xf32>
    %cst_18 = arith.constant dense<0.000000e+00> : vector<24xf32>
    %36 = vector.multi_reduction <add>, %35, %cst_18 [1] : vector<24x8xf32> to vector<24xf32>
    %37 = vector.shape_cast %36 : vector<24xf32> to vector<24x1xf32>
    %38 = arith.addf %28, %37 : vector<24x1xf32>
    %cst_19 = arith.constant 0.020833334 : f32
    %39 = vector.broadcast %cst_19 : f32 to vector<24x1xf32>
    %40 = arith.mulf %38, %39 : vector<24x1xf32>
    %41 = arith.mulf %34, %34 : vector<24x1xf32>
    %42 = arith.subf %40, %41 : vector<24x1xf32>
    %cst_20 = arith.constant 0.000000e+00 : f32
    %43 = vector.broadcast %cst_20 : f32 to vector<24x1xf32>
    %44 = arith.maximumf %42, %43 : vector<24x1xf32>
    %cst_21 = arith.constant 9.99999974E-6 : f32
    %45 = vector.broadcast %cst_21 : f32 to vector<24x1xf32>
    %46 = arith.addf %44, %45 : vector<24x1xf32>
    %47 = math.rsqrt %46 : vector<24x1xf32>
    %c0_22 = arith.constant 0 : index
    %c0_23 = arith.constant 0 : index
    %48 = vector.load %arg6[%c0_22, %c0_23] : memref<8x64xf32, #tpu.memory_space<vmem>>, vector<8x64xf32>
    %cst_24 = arith.constant dense<0.000000e+00> : vector<24x64xf32>
    %49 = tpu.matmul %26, %48, %cst_24 {dimension_numbers = #tpu.dot_dimension_numbers<[1], [0], [0], [1], [0, 0, 1, 1], [], []>} : vector<24x8xf32>, vector<8x64xf32>, vector<24x64xf32> -> vector<24x64xf32>
    %50 = arith.addf %29, %49 : vector<24x64xf32>
    %51 = vector.broadcast %47 : vector<24x1xf32> to vector<24x64xf32>
    %52 = arith.mulf %51, %50 : vector<24x64xf32>
    %53 = arith.mulf %47, %34 : vector<24x1xf32>
    %54 = vector.broadcast %53 : vector<24x1xf32> to vector<24x64xf32>
    %55 = vector.broadcast %13 : vector<1x64xf32> to vector<24x64xf32>
    %56 = arith.mulf %54, %55 : vector<24x64xf32>
    %57 = arith.subf %52, %56 : vector<24x64xf32>
    %58 = vector.broadcast %14 : vector<1x64xf32> to vector<24x64xf32>
    %59 = arith.addf %57, %58 : vector<24x64xf32>
    %cst_25 = arith.constant 5.000000e-01 : f32
    %60 = vector.broadcast %cst_25 : f32 to vector<24x64xf32>
    %61 = arith.mulf %60, %59 : vector<24x64xf32>
    %cst_26 = arith.constant 0.707106769 : f32
    %62 = vector.broadcast %cst_26 : f32 to vector<24x64xf32>
    %63 = arith.mulf %59, %62 : vector<24x64xf32>
    %64 = math.absf %63 : vector<24x64xf32>
    %cst_27 = arith.constant 0.327591091 : f32
    %65 = vector.broadcast %cst_27 : f32 to vector<24x64xf32>
    %66 = arith.mulf %65, %64 : vector<24x64xf32>
    %cst_28 = arith.constant 1.000000e+00 : f32
    %67 = vector.broadcast %cst_28 : f32 to vector<24x64xf32>
    %68 = arith.addf %67, %66 : vector<24x64xf32>
    %69 = tpu.reciprocal %68 {approx = true} : vector<24x64xf32> -> vector<24x64xf32>
    %cst_29 = arith.constant 1.06140542 : f32
    %70 = vector.broadcast %cst_29 : f32 to vector<24x64xf32>
    %71 = arith.mulf %70, %69 : vector<24x64xf32>
    %cst_30 = arith.constant -1.45315206 : f32
    %72 = vector.broadcast %cst_30 : f32 to vector<24x64xf32>
    %73 = arith.addf %71, %72 : vector<24x64xf32>
    %74 = arith.mulf %73, %69 : vector<24x64xf32>
    %cst_31 = arith.constant 1.42141378 : f32
    %75 = vector.broadcast %cst_31 : f32 to vector<24x64xf32>
    %76 = arith.addf %74, %75 : vector<24x64xf32>
    %77 = arith.mulf %76, %69 : vector<24x64xf32>
    %cst_32 = arith.constant -0.284496725 : f32
    %78 = vector.broadcast %cst_32 : f32 to vector<24x64xf32>
    %79 = arith.addf %77, %78 : vector<24x64xf32>
    %80 = arith.mulf %79, %69 : vector<24x64xf32>
    %cst_33 = arith.constant 0.254829586 : f32
    %81 = vector.broadcast %cst_33 : f32 to vector<24x64xf32>
    %82 = arith.addf %80, %81 : vector<24x64xf32>
    %83 = arith.mulf %82, %69 : vector<24x64xf32>
    %cst_34 = arith.constant 0.000000e+00 : f32
    %84 = vector.broadcast %cst_34 : f32 to vector<24x64xf32>
    %85 = arith.subf %84, %64 : vector<24x64xf32>
    %86 = arith.mulf %85, %64 : vector<24x64xf32>
    %87 = math.exp %86 : vector<24x64xf32>
    %88 = arith.mulf %83, %87 : vector<24x64xf32>
    %cst_35 = arith.constant 1.000000e+00 : f32
    %89 = vector.broadcast %cst_35 : f32 to vector<24x64xf32>
    %90 = arith.subf %89, %88 : vector<24x64xf32>
    %cst_36 = arith.constant 0.000000e+00 : f32
    %91 = vector.broadcast %cst_36 : f32 to vector<24x64xf32>
    %92 = arith.cmpf oge, %63, %91 : vector<24x64xf32>
    %cst_37 = arith.constant 0.000000e+00 : f32
    %93 = vector.broadcast %cst_37 : f32 to vector<24x64xf32>
    %94 = arith.subf %93, %90 : vector<24x64xf32>
    %95 = arith.select %92, %90, %94 : vector<24x64xi1>, vector<24x64xf32>
    %cst_38 = arith.constant 1.000000e+00 : f32
    %96 = vector.broadcast %cst_38 : f32 to vector<24x64xf32>
    %97 = arith.addf %96, %95 : vector<24x64xf32>
    %98 = arith.mulf %61, %97 : vector<24x64xf32>
    %cst_39 = arith.constant dense<0.000000e+00> : vector<24xf32>
    %99 = vector.multi_reduction <add>, %98, %cst_39 [1] : vector<24x64xf32> to vector<24xf32>
    %100 = vector.shape_cast %99 : vector<24xf32> to vector<24x1xf32>
    %cst_40 = arith.constant 6.400000e+01 : f32
    %101 = vector.broadcast %cst_40 : f32 to vector<24x1xf32>
    %102 = arith.divf %100, %101 : vector<24x1xf32>
    %103 = vector.broadcast %102 : vector<24x1xf32> to vector<24x64xf32>
    %104 = arith.subf %98, %103 : vector<24x64xf32>
    %105 = arith.mulf %104, %104 : vector<24x64xf32>
    %cst_41 = arith.constant dense<0.000000e+00> : vector<24xf32>
    %106 = vector.multi_reduction <add>, %105, %cst_41 [1] : vector<24x64xf32> to vector<24xf32>
    %107 = vector.shape_cast %106 : vector<24xf32> to vector<24x1xf32>
    %cst_42 = arith.constant 6.400000e+01 : f32
    %108 = vector.broadcast %cst_42 : f32 to vector<24x1xf32>
    %109 = arith.divf %107, %108 : vector<24x1xf32>
    %110 = vector.broadcast %102 : vector<24x1xf32> to vector<24x64xf32>
    %111 = arith.subf %98, %110 : vector<24x64xf32>
    %cst_43 = arith.constant 9.99999974E-6 : f32
    %112 = vector.broadcast %cst_43 : f32 to vector<24x1xf32>
    %113 = arith.addf %109, %112 : vector<24x1xf32>
    %114 = math.rsqrt %113 : vector<24x1xf32>
    %115 = vector.broadcast %114 : vector<24x1xf32> to vector<24x64xf32>
    %116 = arith.mulf %111, %115 : vector<24x64xf32>
    %c0_44 = arith.constant 0 : index
    %c0_45 = arith.constant 0 : index
    %117 = vector.load %arg7[%c0_44, %c0_45] : memref<64x64xf32, #tpu.memory_space<vmem>>, vector<64x64xf32>
    %cst_46 = arith.constant dense<0.000000e+00> : vector<24x64xf32>
    %118 = tpu.matmul %116, %117, %cst_46 {dimension_numbers = #tpu.dot_dimension_numbers<[1], [0], [0], [1], [0, 0, 1, 1], [], []>} : vector<24x64xf32>, vector<64x64xf32>, vector<24x64xf32> -> vector<24x64xf32>
    %119 = vector.broadcast %15 : vector<1x64xf32> to vector<24x64xf32>
    %120 = arith.addf %118, %119 : vector<24x64xf32>
    %cst_47 = arith.constant 5.000000e-01 : f32
    %121 = vector.broadcast %cst_47 : f32 to vector<24x64xf32>
    %122 = arith.mulf %121, %120 : vector<24x64xf32>
    %cst_48 = arith.constant 0.707106769 : f32
    %123 = vector.broadcast %cst_48 : f32 to vector<24x64xf32>
    %124 = arith.mulf %120, %123 : vector<24x64xf32>
    %125 = math.absf %124 : vector<24x64xf32>
    %cst_49 = arith.constant 0.327591091 : f32
    %126 = vector.broadcast %cst_49 : f32 to vector<24x64xf32>
    %127 = arith.mulf %126, %125 : vector<24x64xf32>
    %cst_50 = arith.constant 1.000000e+00 : f32
    %128 = vector.broadcast %cst_50 : f32 to vector<24x64xf32>
    %129 = arith.addf %128, %127 : vector<24x64xf32>
    %130 = tpu.reciprocal %129 {approx = true} : vector<24x64xf32> -> vector<24x64xf32>
    %cst_51 = arith.constant 1.06140542 : f32
    %131 = vector.broadcast %cst_51 : f32 to vector<24x64xf32>
    %132 = arith.mulf %131, %130 : vector<24x64xf32>
    %cst_52 = arith.constant -1.45315206 : f32
    %133 = vector.broadcast %cst_52 : f32 to vector<24x64xf32>
    %134 = arith.addf %132, %133 : vector<24x64xf32>
    %135 = arith.mulf %134, %130 : vector<24x64xf32>
    %cst_53 = arith.constant 1.42141378 : f32
    %136 = vector.broadcast %cst_53 : f32 to vector<24x64xf32>
    %137 = arith.addf %135, %136 : vector<24x64xf32>
    %138 = arith.mulf %137, %130 : vector<24x64xf32>
    %cst_54 = arith.constant -0.284496725 : f32
    %139 = vector.broadcast %cst_54 : f32 to vector<24x64xf32>
    %140 = arith.addf %138, %139 : vector<24x64xf32>
    %141 = arith.mulf %140, %130 : vector<24x64xf32>
    %cst_55 = arith.constant 0.254829586 : f32
    %142 = vector.broadcast %cst_55 : f32 to vector<24x64xf32>
    %143 = arith.addf %141, %142 : vector<24x64xf32>
    %144 = arith.mulf %143, %130 : vector<24x64xf32>
    %cst_56 = arith.constant 0.000000e+00 : f32
    %145 = vector.broadcast %cst_56 : f32 to vector<24x64xf32>
    %146 = arith.subf %145, %125 : vector<24x64xf32>
    %147 = arith.mulf %146, %125 : vector<24x64xf32>
    %148 = math.exp %147 : vector<24x64xf32>
    %149 = arith.mulf %144, %148 : vector<24x64xf32>
    %cst_57 = arith.constant 1.000000e+00 : f32
    %150 = vector.broadcast %cst_57 : f32 to vector<24x64xf32>
    %151 = arith.subf %150, %149 : vector<24x64xf32>
    %cst_58 = arith.constant 0.000000e+00 : f32
    %152 = vector.broadcast %cst_58 : f32 to vector<24x64xf32>
    %153 = arith.cmpf oge, %124, %152 : vector<24x64xf32>
    %cst_59 = arith.constant 0.000000e+00 : f32
    %154 = vector.broadcast %cst_59 : f32 to vector<24x64xf32>
    %155 = arith.subf %154, %151 : vector<24x64xf32>
    %156 = arith.select %153, %151, %155 : vector<24x64xi1>, vector<24x64xf32>
    %cst_60 = arith.constant 1.000000e+00 : f32
    %157 = vector.broadcast %cst_60 : f32 to vector<24x64xf32>
    %158 = arith.addf %157, %156 : vector<24x64xf32>
    %159 = arith.mulf %122, %158 : vector<24x64xf32>
    %cst_61 = arith.constant dense<0.000000e+00> : vector<24xf32>
    %160 = vector.multi_reduction <add>, %159, %cst_61 [1] : vector<24x64xf32> to vector<24xf32>
    %161 = vector.shape_cast %160 : vector<24xf32> to vector<24x1xf32>
    %cst_62 = arith.constant 6.400000e+01 : f32
    %162 = vector.broadcast %cst_62 : f32 to vector<24x1xf32>
    %163 = arith.divf %161, %162 : vector<24x1xf32>
    %164 = vector.broadcast %163 : vector<24x1xf32> to vector<24x64xf32>
    %165 = arith.subf %159, %164 : vector<24x64xf32>
    %166 = arith.mulf %165, %165 : vector<24x64xf32>
    %cst_63 = arith.constant dense<0.000000e+00> : vector<24xf32>
    %167 = vector.multi_reduction <add>, %166, %cst_63 [1] : vector<24x64xf32> to vector<24xf32>
    %168 = vector.shape_cast %167 : vector<24xf32> to vector<24x1xf32>
    %cst_64 = arith.constant 6.400000e+01 : f32
    %169 = vector.broadcast %cst_64 : f32 to vector<24x1xf32>
    %170 = arith.divf %168, %169 : vector<24x1xf32>
    %171 = vector.broadcast %163 : vector<24x1xf32> to vector<24x64xf32>
    %172 = arith.subf %159, %171 : vector<24x64xf32>
    %cst_65 = arith.constant 9.99999974E-6 : f32
    %173 = vector.broadcast %cst_65 : f32 to vector<24x1xf32>
    %174 = arith.addf %170, %173 : vector<24x1xf32>
    %175 = math.rsqrt %174 : vector<24x1xf32>
    %176 = vector.broadcast %175 : vector<24x1xf32> to vector<24x64xf32>
    %177 = arith.mulf %172, %176 : vector<24x64xf32>
    %178 = vector.broadcast %16 : vector<1x64xf32> to vector<24x64xf32>
    %179 = arith.mulf %177, %178 : vector<24x64xf32>
    %cst_66 = arith.constant dense<0.000000e+00> : vector<24xf32>
    %180 = vector.multi_reduction <add>, %179, %cst_66 [1] : vector<24x64xf32> to vector<24xf32>
    %181 = vector.shape_cast %180 : vector<24xf32> to vector<24x1xf32>
    %182 = vector.broadcast %17 : vector<1x1xf32> to vector<24x1xf32>
    %183 = arith.addf %181, %182 : vector<24x1xf32>
    %cst_67 = arith.constant 0.000000e+00 : f32
    %184 = vector.broadcast %cst_67 : f32 to vector<8x1xf32>
    %cst_68 = arith.constant 0.000000e+00 : f32
    %185 = vector.broadcast %cst_68 : f32 to vector<8x1xf32>
    %186 = vector.extract_strided_slice %183 {offsets = [0, 0], sizes = [8, 1], strides = [1, 1]} : vector<24x1xf32> to vector<8x1xf32>
    %187 = vector.extract_strided_slice %7 {offsets = [0, 0], sizes = [8, 1], strides = [1, 1]} : vector<8x3xf32> to vector<8x1xf32>
    %188 = arith.mulf %186, %187 : vector<8x1xf32>
    %189 = arith.addf %184, %188 : vector<8x1xf32>
    %190 = vector.extract_strided_slice %8 {offsets = [0, 0], sizes = [8, 1], strides = [1, 1]} : vector<8x3xf32> to vector<8x1xf32>
    %191 = arith.mulf %186, %190 : vector<8x1xf32>
    %192 = arith.addf %185, %191 : vector<8x1xf32>
    %193 = vector.extract_strided_slice %183 {offsets = [8, 0], sizes = [8, 1], strides = [1, 1]} : vector<24x1xf32> to vector<8x1xf32>
    %194 = vector.extract_strided_slice %7 {offsets = [0, 1], sizes = [8, 1], strides = [1, 1]} : vector<8x3xf32> to vector<8x1xf32>
    %195 = arith.mulf %193, %194 : vector<8x1xf32>
    %196 = arith.addf %189, %195 : vector<8x1xf32>
    %197 = vector.extract_strided_slice %8 {offsets = [0, 1], sizes = [8, 1], strides = [1, 1]} : vector<8x3xf32> to vector<8x1xf32>
    %198 = arith.mulf %193, %197 : vector<8x1xf32>
    %199 = arith.addf %192, %198 : vector<8x1xf32>
    %200 = vector.extract_strided_slice %183 {offsets = [16, 0], sizes = [8, 1], strides = [1, 1]} : vector<24x1xf32> to vector<8x1xf32>
    %201 = vector.extract_strided_slice %7 {offsets = [0, 2], sizes = [8, 1], strides = [1, 1]} : vector<8x3xf32> to vector<8x1xf32>
    %202 = arith.mulf %200, %201 : vector<8x1xf32>
    %203 = arith.addf %196, %202 : vector<8x1xf32>
    %204 = vector.extract_strided_slice %8 {offsets = [0, 2], sizes = [8, 1], strides = [1, 1]} : vector<8x3xf32> to vector<8x1xf32>
    %205 = arith.mulf %200, %204 : vector<8x1xf32>
    %206 = arith.addf %199, %205 : vector<8x1xf32>
    %c0_69 = arith.constant 0 : index
    %c0_70 = arith.constant 0 : index
    %207 = vector.load %arg12[%c0_69, %c0_70] : memref<8x64xf32, #tpu.memory_space<vmem>>, vector<8x64xf32>
    %208 = vector.extract_strided_slice %207 {offsets = [0, 0], sizes = [1, 64], strides = [1, 1]} : vector<8x64xf32> to vector<1x64xf32>
    %209 = vector.extract_strided_slice %207 {offsets = [1, 0], sizes = [1, 64], strides = [1, 1]} : vector<8x64xf32> to vector<1x64xf32>
    %210 = vector.extract_strided_slice %207 {offsets = [2, 0], sizes = [1, 64], strides = [1, 1]} : vector<8x64xf32> to vector<1x64xf32>
    %211 = vector.extract_strided_slice %207 {offsets = [3, 0], sizes = [1, 64], strides = [1, 1]} : vector<8x64xf32> to vector<1x64xf32>
    %212 = vector.extract_strided_slice %207 {offsets = [4, 0], sizes = [1, 1], strides = [1, 1]} : vector<8x64xf32> to vector<1x1xf32>
    %c0_71 = arith.constant 0 : index
    %c0_72 = arith.constant 0 : index
    %213 = vector.load %arg9[%c0_71, %c0_72] : memref<40x64xf32, #tpu.memory_space<vmem>>, vector<40x64xf32>
    %cst_73 = arith.constant dense<0.000000e+00> : vector<8x64xf32>
    %214 = tpu.matmul %0, %213, %cst_73 {dimension_numbers = #tpu.dot_dimension_numbers<[1], [0], [0], [1], [0, 0, 1, 1], [], []>} : vector<8x40xf32>, vector<40x64xf32>, vector<8x64xf32> -> vector<8x64xf32>
    %c0_74 = arith.constant 0 : index
    %c0_75 = arith.constant 0 : index
    %c0_76 = arith.constant 0 : index
    %215 = vector.load %arg3[%c0_74, %c0_75, %c0_76] : memref<5x8x8xf32, #tpu.memory_space<vmem>>, vector<1x8x8xf32>
    %216 = vector.shape_cast %215 : vector<1x8x8xf32> to vector<8x8xf32>
    %c1_77 = arith.constant 1 : index
    %c0_78 = arith.constant 0 : index
    %c0_79 = arith.constant 0 : index
    %217 = vector.load %arg3[%c1_77, %c0_78, %c0_79] : memref<5x8x8xf32, #tpu.memory_space<vmem>>, vector<1x8x8xf32>
    %218 = vector.shape_cast %217 : vector<1x8x8xf32> to vector<8x8xf32>
    %c2_80 = arith.constant 2 : index
    %c0_81 = arith.constant 0 : index
    %c0_82 = arith.constant 0 : index
    %219 = vector.load %arg3[%c2_80, %c0_81, %c0_82] : memref<5x8x8xf32, #tpu.memory_space<vmem>>, vector<1x8x8xf32>
    %220 = vector.shape_cast %219 : vector<1x8x8xf32> to vector<8x8xf32>
    %c3 = arith.constant 3 : index
    %c0_83 = arith.constant 0 : index
    %c0_84 = arith.constant 0 : index
    %221 = vector.load %arg3[%c3, %c0_83, %c0_84] : memref<5x8x8xf32, #tpu.memory_space<vmem>>, vector<1x8x8xf32>
    %222 = vector.shape_cast %221 : vector<1x8x8xf32> to vector<8x8xf32>
    %c4 = arith.constant 4 : index
    %c0_85 = arith.constant 0 : index
    %c0_86 = arith.constant 0 : index
    %223 = vector.load %arg3[%c4, %c0_85, %c0_86] : memref<5x8x8xf32, #tpu.memory_space<vmem>>, vector<1x8x8xf32>
    %224 = vector.shape_cast %223 : vector<1x8x8xf32> to vector<8x8xf32>
    %225 = tpu.concatenate %216, %218, %220, %222, %224 in 0 : vector<8x8xf32>, vector<8x8xf32>, vector<8x8xf32>, vector<8x8xf32>, vector<8x8xf32> -> vector<40x8xf32>
    %226 = tpu.concatenate %2, %2, %2, %2, %2 in 0 : vector<8x1xf32>, vector<8x1xf32>, vector<8x1xf32>, vector<8x1xf32>, vector<8x1xf32> -> vector<40x1xf32>
    %227 = tpu.concatenate %5, %5, %5, %5, %5 in 0 : vector<8x1xf32>, vector<8x1xf32>, vector<8x1xf32>, vector<8x1xf32>, vector<8x1xf32> -> vector<40x1xf32>
    %228 = tpu.concatenate %214, %214, %214, %214, %214 in 0 : vector<8x64xf32>, vector<8x64xf32>, vector<8x64xf32>, vector<8x64xf32>, vector<8x64xf32> -> vector<40x64xf32>
    %cst_87 = arith.constant dense<0.000000e+00> : vector<40xf32>
    %229 = vector.multi_reduction <add>, %225, %cst_87 [1] : vector<40x8xf32> to vector<40xf32>
    %230 = vector.shape_cast %229 : vector<40xf32> to vector<40x1xf32>
    %231 = arith.addf %226, %230 : vector<40x1xf32>
    %cst_88 = arith.constant 0.020833334 : f32
    %232 = vector.broadcast %cst_88 : f32 to vector<40x1xf32>
    %233 = arith.mulf %231, %232 : vector<40x1xf32>
    %234 = arith.mulf %225, %225 : vector<40x8xf32>
    %cst_89 = arith.constant dense<0.000000e+00> : vector<40xf32>
    %235 = vector.multi_reduction <add>, %234, %cst_89 [1] : vector<40x8xf32> to vector<40xf32>
    %236 = vector.shape_cast %235 : vector<40xf32> to vector<40x1xf32>
    %237 = arith.addf %227, %236 : vector<40x1xf32>
    %cst_90 = arith.constant 0.020833334 : f32
    %238 = vector.broadcast %cst_90 : f32 to vector<40x1xf32>
    %239 = arith.mulf %237, %238 : vector<40x1xf32>
    %240 = arith.mulf %233, %233 : vector<40x1xf32>
    %241 = arith.subf %239, %240 : vector<40x1xf32>
    %cst_91 = arith.constant 0.000000e+00 : f32
    %242 = vector.broadcast %cst_91 : f32 to vector<40x1xf32>
    %243 = arith.maximumf %241, %242 : vector<40x1xf32>
    %cst_92 = arith.constant 9.99999974E-6 : f32
    %244 = vector.broadcast %cst_92 : f32 to vector<40x1xf32>
    %245 = arith.addf %243, %244 : vector<40x1xf32>
    %246 = math.rsqrt %245 : vector<40x1xf32>
    %c0_93 = arith.constant 0 : index
    %c0_94 = arith.constant 0 : index
    %247 = vector.load %arg10[%c0_93, %c0_94] : memref<8x64xf32, #tpu.memory_space<vmem>>, vector<8x64xf32>
    %cst_95 = arith.constant dense<0.000000e+00> : vector<40x64xf32>
    %248 = tpu.matmul %225, %247, %cst_95 {dimension_numbers = #tpu.dot_dimension_numbers<[1], [0], [0], [1], [0, 0, 1, 1], [], []>} : vector<40x8xf32>, vector<8x64xf32>, vector<40x64xf32> -> vector<40x64xf32>
    %249 = arith.addf %228, %248 : vector<40x64xf32>
    %250 = vector.broadcast %246 : vector<40x1xf32> to vector<40x64xf32>
    %251 = arith.mulf %250, %249 : vector<40x64xf32>
    %252 = arith.mulf %246, %233 : vector<40x1xf32>
    %253 = vector.broadcast %252 : vector<40x1xf32> to vector<40x64xf32>
    %254 = vector.broadcast %208 : vector<1x64xf32> to vector<40x64xf32>
    %255 = arith.mulf %253, %254 : vector<40x64xf32>
    %256 = arith.subf %251, %255 : vector<40x64xf32>
    %257 = vector.broadcast %209 : vector<1x64xf32> to vector<40x64xf32>
    %258 = arith.addf %256, %257 : vector<40x64xf32>
    %cst_96 = arith.constant 5.000000e-01 : f32
    %259 = vector.broadcast %cst_96 : f32 to vector<40x64xf32>
    %260 = arith.mulf %259, %258 : vector<40x64xf32>
    %cst_97 = arith.constant 0.707106769 : f32
    %261 = vector.broadcast %cst_97 : f32 to vector<40x64xf32>
    %262 = arith.mulf %258, %261 : vector<40x64xf32>
    %263 = math.absf %262 : vector<40x64xf32>
    %cst_98 = arith.constant 0.327591091 : f32
    %264 = vector.broadcast %cst_98 : f32 to vector<40x64xf32>
    %265 = arith.mulf %264, %263 : vector<40x64xf32>
    %cst_99 = arith.constant 1.000000e+00 : f32
    %266 = vector.broadcast %cst_99 : f32 to vector<40x64xf32>
    %267 = arith.addf %266, %265 : vector<40x64xf32>
    %268 = tpu.reciprocal %267 {approx = true} : vector<40x64xf32> -> vector<40x64xf32>
    %cst_100 = arith.constant 1.06140542 : f32
    %269 = vector.broadcast %cst_100 : f32 to vector<40x64xf32>
    %270 = arith.mulf %269, %268 : vector<40x64xf32>
    %cst_101 = arith.constant -1.45315206 : f32
    %271 = vector.broadcast %cst_101 : f32 to vector<40x64xf32>
    %272 = arith.addf %270, %271 : vector<40x64xf32>
    %273 = arith.mulf %272, %268 : vector<40x64xf32>
    %cst_102 = arith.constant 1.42141378 : f32
    %274 = vector.broadcast %cst_102 : f32 to vector<40x64xf32>
    %275 = arith.addf %273, %274 : vector<40x64xf32>
    %276 = arith.mulf %275, %268 : vector<40x64xf32>
    %cst_103 = arith.constant -0.284496725 : f32
    %277 = vector.broadcast %cst_103 : f32 to vector<40x64xf32>
    %278 = arith.addf %276, %277 : vector<40x64xf32>
    %279 = arith.mulf %278, %268 : vector<40x64xf32>
    %cst_104 = arith.constant 0.254829586 : f32
    %280 = vector.broadcast %cst_104 : f32 to vector<40x64xf32>
    %281 = arith.addf %279, %280 : vector<40x64xf32>
    %282 = arith.mulf %281, %268 : vector<40x64xf32>
    %cst_105 = arith.constant 0.000000e+00 : f32
    %283 = vector.broadcast %cst_105 : f32 to vector<40x64xf32>
    %284 = arith.subf %283, %263 : vector<40x64xf32>
    %285 = arith.mulf %284, %263 : vector<40x64xf32>
    %286 = math.exp %285 : vector<40x64xf32>
    %287 = arith.mulf %282, %286 : vector<40x64xf32>
    %cst_106 = arith.constant 1.000000e+00 : f32
    %288 = vector.broadcast %cst_106 : f32 to vector<40x64xf32>
    %289 = arith.subf %288, %287 : vector<40x64xf32>
    %cst_107 = arith.constant 0.000000e+00 : f32
    %290 = vector.broadcast %cst_107 : f32 to vector<40x64xf32>
    %291 = arith.cmpf oge, %262, %290 : vector<40x64xf32>
    %cst_108 = arith.constant 0.000000e+00 : f32
    %292 = vector.broadcast %cst_108 : f32 to vector<40x64xf32>
    %293 = arith.subf %292, %289 : vector<40x64xf32>
    %294 = arith.select %291, %289, %293 : vector<40x64xi1>, vector<40x64xf32>
    %cst_109 = arith.constant 1.000000e+00 : f32
    %295 = vector.broadcast %cst_109 : f32 to vector<40x64xf32>
    %296 = arith.addf %295, %294 : vector<40x64xf32>
    %297 = arith.mulf %260, %296 : vector<40x64xf32>
    %cst_110 = arith.constant dense<0.000000e+00> : vector<40xf32>
    %298 = vector.multi_reduction <add>, %297, %cst_110 [1] : vector<40x64xf32> to vector<40xf32>
    %299 = vector.shape_cast %298 : vector<40xf32> to vector<40x1xf32>
    %cst_111 = arith.constant 6.400000e+01 : f32
    %300 = vector.broadcast %cst_111 : f32 to vector<40x1xf32>
    %301 = arith.divf %299, %300 : vector<40x1xf32>
    %302 = vector.broadcast %301 : vector<40x1xf32> to vector<40x64xf32>
    %303 = arith.subf %297, %302 : vector<40x64xf32>
    %304 = arith.mulf %303, %303 : vector<40x64xf32>
    %cst_112 = arith.constant dense<0.000000e+00> : vector<40xf32>
    %305 = vector.multi_reduction <add>, %304, %cst_112 [1] : vector<40x64xf32> to vector<40xf32>
    %306 = vector.shape_cast %305 : vector<40xf32> to vector<40x1xf32>
    %cst_113 = arith.constant 6.400000e+01 : f32
    %307 = vector.broadcast %cst_113 : f32 to vector<40x1xf32>
    %308 = arith.divf %306, %307 : vector<40x1xf32>
    %309 = vector.broadcast %301 : vector<40x1xf32> to vector<40x64xf32>
    %310 = arith.subf %297, %309 : vector<40x64xf32>
    %cst_114 = arith.constant 9.99999974E-6 : f32
    %311 = vector.broadcast %cst_114 : f32 to vector<40x1xf32>
    %312 = arith.addf %308, %311 : vector<40x1xf32>
    %313 = math.rsqrt %312 : vector<40x1xf32>
    %314 = vector.broadcast %313 : vector<40x1xf32> to vector<40x64xf32>
    %315 = arith.mulf %310, %314 : vector<40x64xf32>
    %c0_115 = arith.constant 0 : index
    %c0_116 = arith.constant 0 : index
    %316 = vector.load %arg11[%c0_115, %c0_116] : memref<64x64xf32, #tpu.memory_space<vmem>>, vector<64x64xf32>
    %cst_117 = arith.constant dense<0.000000e+00> : vector<40x64xf32>
    %317 = tpu.matmul %315, %316, %cst_117 {dimension_numbers = #tpu.dot_dimension_numbers<[1], [0], [0], [1], [0, 0, 1, 1], [], []>} : vector<40x64xf32>, vector<64x64xf32>, vector<40x64xf32> -> vector<40x64xf32>
    %318 = vector.broadcast %210 : vector<1x64xf32> to vector<40x64xf32>
    %319 = arith.addf %317, %318 : vector<40x64xf32>
    %cst_118 = arith.constant 5.000000e-01 : f32
    %320 = vector.broadcast %cst_118 : f32 to vector<40x64xf32>
    %321 = arith.mulf %320, %319 : vector<40x64xf32>
    %cst_119 = arith.constant 0.707106769 : f32
    %322 = vector.broadcast %cst_119 : f32 to vector<40x64xf32>
    %323 = arith.mulf %319, %322 : vector<40x64xf32>
    %324 = math.absf %323 : vector<40x64xf32>
    %cst_120 = arith.constant 0.327591091 : f32
    %325 = vector.broadcast %cst_120 : f32 to vector<40x64xf32>
    %326 = arith.mulf %325, %324 : vector<40x64xf32>
    %cst_121 = arith.constant 1.000000e+00 : f32
    %327 = vector.broadcast %cst_121 : f32 to vector<40x64xf32>
    %328 = arith.addf %327, %326 : vector<40x64xf32>
    %329 = tpu.reciprocal %328 {approx = true} : vector<40x64xf32> -> vector<40x64xf32>
    %cst_122 = arith.constant 1.06140542 : f32
    %330 = vector.broadcast %cst_122 : f32 to vector<40x64xf32>
    %331 = arith.mulf %330, %329 : vector<40x64xf32>
    %cst_123 = arith.constant -1.45315206 : f32
    %332 = vector.broadcast %cst_123 : f32 to vector<40x64xf32>
    %333 = arith.addf %331, %332 : vector<40x64xf32>
    %334 = arith.mulf %333, %329 : vector<40x64xf32>
    %cst_124 = arith.constant 1.42141378 : f32
    %335 = vector.broadcast %cst_124 : f32 to vector<40x64xf32>
    %336 = arith.addf %334, %335 : vector<40x64xf32>
    %337 = arith.mulf %336, %329 : vector<40x64xf32>
    %cst_125 = arith.constant -0.284496725 : f32
    %338 = vector.broadcast %cst_125 : f32 to vector<40x64xf32>
    %339 = arith.addf %337, %338 : vector<40x64xf32>
    %340 = arith.mulf %339, %329 : vector<40x64xf32>
    %cst_126 = arith.constant 0.254829586 : f32
    %341 = vector.broadcast %cst_126 : f32 to vector<40x64xf32>
    %342 = arith.addf %340, %341 : vector<40x64xf32>
    %343 = arith.mulf %342, %329 : vector<40x64xf32>
    %cst_127 = arith.constant 0.000000e+00 : f32
    %344 = vector.broadcast %cst_127 : f32 to vector<40x64xf32>
    %345 = arith.subf %344, %324 : vector<40x64xf32>
    %346 = arith.mulf %345, %324 : vector<40x64xf32>
    %347 = math.exp %346 : vector<40x64xf32>
    %348 = arith.mulf %343, %347 : vector<40x64xf32>
    %cst_128 = arith.constant 1.000000e+00 : f32
    %349 = vector.broadcast %cst_128 : f32 to vector<40x64xf32>
    %350 = arith.subf %349, %348 : vector<40x64xf32>
    %cst_129 = arith.constant 0.000000e+00 : f32
    %351 = vector.broadcast %cst_129 : f32 to vector<40x64xf32>
    %352 = arith.cmpf oge, %323, %351 : vector<40x64xf32>
    %cst_130 = arith.constant 0.000000e+00 : f32
    %353 = vector.broadcast %cst_130 : f32 to vector<40x64xf32>
    %354 = arith.subf %353, %350 : vector<40x64xf32>
    %355 = arith.select %352, %350, %354 : vector<40x64xi1>, vector<40x64xf32>
    %cst_131 = arith.constant 1.000000e+00 : f32
    %356 = vector.broadcast %cst_131 : f32 to vector<40x64xf32>
    %357 = arith.addf %356, %355 : vector<40x64xf32>
    %358 = arith.mulf %321, %357 : vector<40x64xf32>
    %cst_132 = arith.constant dense<0.000000e+00> : vector<40xf32>
    %359 = vector.multi_reduction <add>, %358, %cst_132 [1] : vector<40x64xf32> to vector<40xf32>
    %360 = vector.shape_cast %359 : vector<40xf32> to vector<40x1xf32>
    %cst_133 = arith.constant 6.400000e+01 : f32
    %361 = vector.broadcast %cst_133 : f32 to vector<40x1xf32>
    %362 = arith.divf %360, %361 : vector<40x1xf32>
    %363 = vector.broadcast %362 : vector<40x1xf32> to vector<40x64xf32>
    %364 = arith.subf %358, %363 : vector<40x64xf32>
    %365 = arith.mulf %364, %364 : vector<40x64xf32>
    %cst_134 = arith.constant dense<0.000000e+00> : vector<40xf32>
    %366 = vector.multi_reduction <add>, %365, %cst_134 [1] : vector<40x64xf32> to vector<40xf32>
    %367 = vector.shape_cast %366 : vector<40xf32> to vector<40x1xf32>
    %cst_135 = arith.constant 6.400000e+01 : f32
    %368 = vector.broadcast %cst_135 : f32 to vector<40x1xf32>
    %369 = arith.divf %367, %368 : vector<40x1xf32>
    %370 = vector.broadcast %362 : vector<40x1xf32> to vector<40x64xf32>
    %371 = arith.subf %358, %370 : vector<40x64xf32>
    %cst_136 = arith.constant 9.99999974E-6 : f32
    %372 = vector.broadcast %cst_136 : f32 to vector<40x1xf32>
    %373 = arith.addf %369, %372 : vector<40x1xf32>
    %374 = math.rsqrt %373 : vector<40x1xf32>
    %375 = vector.broadcast %374 : vector<40x1xf32> to vector<40x64xf32>
    %376 = arith.mulf %371, %375 : vector<40x64xf32>
    %377 = vector.broadcast %211 : vector<1x64xf32> to vector<40x64xf32>
    %378 = arith.mulf %376, %377 : vector<40x64xf32>
    %cst_137 = arith.constant dense<0.000000e+00> : vector<40xf32>
    %379 = vector.multi_reduction <add>, %378, %cst_137 [1] : vector<40x64xf32> to vector<40xf32>
    %380 = vector.shape_cast %379 : vector<40xf32> to vector<40x1xf32>
    %381 = vector.broadcast %212 : vector<1x1xf32> to vector<40x1xf32>
    %382 = arith.addf %380, %381 : vector<40x1xf32>
    %cst_138 = arith.constant 0.000000e+00 : f32
    %383 = vector.broadcast %cst_138 : f32 to vector<8x1xf32>
    %cst_139 = arith.constant 0.000000e+00 : f32
    %384 = vector.broadcast %cst_139 : f32 to vector<8x1xf32>
    %385 = vector.extract_strided_slice %382 {offsets = [0, 0], sizes = [8, 1], strides = [1, 1]} : vector<40x1xf32> to vector<8x1xf32>
    %386 = vector.extract_strided_slice %9 {offsets = [0, 0], sizes = [8, 1], strides = [1, 1]} : vector<8x5xf32> to vector<8x1xf32>
    %387 = arith.mulf %385, %386 : vector<8x1xf32>
    %388 = arith.addf %383, %387 : vector<8x1xf32>
    %389 = vector.extract_strided_slice %10 {offsets = [0, 0], sizes = [8, 1], strides = [1, 1]} : vector<8x5xf32> to vector<8x1xf32>
    %390 = arith.mulf %385, %389 : vector<8x1xf32>
    %391 = arith.addf %384, %390 : vector<8x1xf32>
    %392 = vector.extract_strided_slice %382 {offsets = [8, 0], sizes = [8, 1], strides = [1, 1]} : vector<40x1xf32> to vector<8x1xf32>
    %393 = vector.extract_strided_slice %9 {offsets = [0, 1], sizes = [8, 1], strides = [1, 1]} : vector<8x5xf32> to vector<8x1xf32>
    %394 = arith.mulf %392, %393 : vector<8x1xf32>
    %395 = arith.addf %388, %394 : vector<8x1xf32>
    %396 = vector.extract_strided_slice %10 {offsets = [0, 1], sizes = [8, 1], strides = [1, 1]} : vector<8x5xf32> to vector<8x1xf32>
    %397 = arith.mulf %392, %396 : vector<8x1xf32>
    %398 = arith.addf %391, %397 : vector<8x1xf32>
    %399 = vector.extract_strided_slice %382 {offsets = [16, 0], sizes = [8, 1], strides = [1, 1]} : vector<40x1xf32> to vector<8x1xf32>
    %400 = vector.extract_strided_slice %9 {offsets = [0, 2], sizes = [8, 1], strides = [1, 1]} : vector<8x5xf32> to vector<8x1xf32>
    %401 = arith.mulf %399, %400 : vector<8x1xf32>
    %402 = arith.addf %395, %401 : vector<8x1xf32>
    %403 = vector.extract_strided_slice %10 {offsets = [0, 2], sizes = [8, 1], strides = [1, 1]} : vector<8x5xf32> to vector<8x1xf32>
    %404 = arith.mulf %399, %403 : vector<8x1xf32>
    %405 = arith.addf %398, %404 : vector<8x1xf32>
    %406 = vector.extract_strided_slice %382 {offsets = [24, 0], sizes = [8, 1], strides = [1, 1]} : vector<40x1xf32> to vector<8x1xf32>
    %407 = vector.extract_strided_slice %9 {offsets = [0, 3], sizes = [8, 1], strides = [1, 1]} : vector<8x5xf32> to vector<8x1xf32>
    %408 = arith.mulf %406, %407 : vector<8x1xf32>
    %409 = arith.addf %402, %408 : vector<8x1xf32>
    %410 = vector.extract_strided_slice %10 {offsets = [0, 3], sizes = [8, 1], strides = [1, 1]} : vector<8x5xf32> to vector<8x1xf32>
    %411 = arith.mulf %406, %410 : vector<8x1xf32>
    %412 = arith.addf %405, %411 : vector<8x1xf32>
    %413 = vector.extract_strided_slice %382 {offsets = [32, 0], sizes = [8, 1], strides = [1, 1]} : vector<40x1xf32> to vector<8x1xf32>
    %414 = vector.extract_strided_slice %9 {offsets = [0, 4], sizes = [8, 1], strides = [1, 1]} : vector<8x5xf32> to vector<8x1xf32>
    %415 = arith.mulf %413, %414 : vector<8x1xf32>
    %416 = arith.addf %409, %415 : vector<8x1xf32>
    %417 = vector.extract_strided_slice %10 {offsets = [0, 4], sizes = [8, 1], strides = [1, 1]} : vector<8x5xf32> to vector<8x1xf32>
    %418 = arith.mulf %413, %417 : vector<8x1xf32>
    %419 = arith.addf %412, %418 : vector<8x1xf32>
    %420 = arith.addf %203, %416 : vector<8x1xf32>
    %421 = arith.addf %206, %419 : vector<8x1xf32>
    %422 = vector.extract_strided_slice %11 {offsets = [0, 0], sizes = [8, 1], strides = [1, 1]} : vector<8x2xf32> to vector<8x1xf32>
    %423 = vector.extract_strided_slice %11 {offsets = [0, 1], sizes = [8, 1], strides = [1, 1]} : vector<8x2xf32> to vector<8x1xf32>
    %424 = arith.addf %422, %421 : vector<8x1xf32>
    %425 = arith.subf %422, %421 : vector<8x1xf32>
    %426 = arith.addf %423, %420 : vector<8x1xf32>
    %427 = arith.subf %423, %420 : vector<8x1xf32>
    %428 = tpu.concatenate %424, %425, %426, %427 in 1 : vector<8x1xf32>, vector<8x1xf32>, vector<8x1xf32>, vector<8x1xf32> -> vector<8x4xf32>
    %c0_140 = arith.constant 0 : index
    %c0_141 = arith.constant 0 : index
    %429 = vector.load %arg13[%c0_140, %c0_141] : memref<8x4xf32, #tpu.memory_space<vmem>>, vector<8x4xf32>
    tpu.vector_store %arg13[%c0_140, %c0_141], %428 {strides = array<i32>} : memref<8x4xf32, #tpu.memory_space<vmem>>, vector<8x4xf32>,
    return
  }
  func.func @transform_0(%arg0: i32) -> (i32, i32) {
    %c0_i32 = arith.constant 0 : i32
    %c0_i32_0 = arith.constant 0 : i32
    return %arg0, %c0_i32 : i32, i32
  }
  func.func @transform_1(%arg0: i32) -> (i32, i32, i32) {
    %c0_i32 = arith.constant 0 : i32
    %c0_i32_0 = arith.constant 0 : i32
    %c0_i32_1 = arith.constant 0 : i32
    return %c0_i32, %arg0, %c0_i32_0 : i32, i32, i32
  }
  func.func @transform_2(%arg0: i32) -> (i32, i32, i32) {
    %c0_i32 = arith.constant 0 : i32
    %c0_i32_0 = arith.constant 0 : i32
    %c0_i32_1 = arith.constant 0 : i32
    return %c0_i32, %arg0, %c0_i32_0 : i32, i32, i32
  }
  func.func @transform_3(%arg0: i32) -> (i32, i32) {
    %c0_i32 = arith.constant 0 : i32
    %c0_i32_0 = arith.constant 0 : i32
    return %arg0, %c0_i32 : i32, i32
  }
  func.func @transform_4(%arg0: i32) -> (i32, i32) {
    %c0_i32 = arith.constant 0 : i32
    %c0_i32_0 = arith.constant 0 : i32
    %c0_i32_1 = arith.constant 0 : i32
    return %c0_i32, %c0_i32_0 : i32, i32
  }
  func.func @transform_5(%arg0: i32) -> (i32, i32) {
    %c0_i32 = arith.constant 0 : i32
    %c0_i32_0 = arith.constant 0 : i32
    %c0_i32_1 = arith.constant 0 : i32
    return %c0_i32, %c0_i32_0 : i32, i32
  }
  func.func @transform_6(%arg0: i32) -> (i32, i32) {
    %c0_i32 = arith.constant 0 : i32
    %c0_i32_0 = arith.constant 0 : i32
    %c0_i32_1 = arith.constant 0 : i32
    return %c0_i32, %c0_i32_0 : i32, i32
  }
  func.func @transform_7(%arg0: i32) -> (i32, i32) {
    %c0_i32 = arith.constant 0 : i32
    %c0_i32_0 = arith.constant 0 : i32
    %c0_i32_1 = arith.constant 0 : i32
    return %c0_i32, %c0_i32_0 : i32, i32
  }
  func.func @transform_8(%arg0: i32) -> (i32, i32) {
    %c0_i32 = arith.constant 0 : i32
    %c0_i32_0 = arith.constant 0 : i32
    %c0_i32_1 = arith.constant 0 : i32
    return %c0_i32, %c0_i32_0 : i32, i32
  }
  func.func @transform_9(%arg0: i32) -> (i32, i32) {
    %c0_i32 = arith.constant 0 : i32
    %c0_i32_0 = arith.constant 0 : i32
    %c0_i32_1 = arith.constant 0 : i32
    return %c0_i32, %c0_i32_0 : i32, i32
  }
  func.func @transform_10(%arg0: i32) -> (i32, i32) {
    %c0_i32 = arith.constant 0 : i32
    %c0_i32_0 = arith.constant 0 : i32
    %c0_i32_1 = arith.constant 0 : i32
    return %c0_i32, %c0_i32_0 : i32, i32
  }
  func.func @transform_11(%arg0: i32) -> (i32, i32) {
    %c0_i32 = arith.constant 0 : i32
    %c0_i32_0 = arith.constant 0 : i32
    %c0_i32_1 = arith.constant 0 : i32
    return %c0_i32, %c0_i32_0 : i32, i32
  }
  func.func @transform_12(%arg0: i32) -> (i32, i32) {
    %c0_i32 = arith.constant 0 : i32
    %c0_i32_0 = arith.constant 0 : i32
    return %arg0, %c0_i32 : i32, i32
  }
}

</mosaic_0001>

<llo_original>
// kernel: tpu_custom_call.1
$region0: #{tpu_custom_call.1}
  #allocation0 [shape = 'u32[]', space=smem, size = 0x4, offset = 0x4, fixed_abs, tag = 'smem constant byte address 0x4 - core index']
  #allocation1 [shape = 'u32[144,128]{1,0:T(1,128)}', space=vmem, size = 0x12000, scoped, tag = 'internal scratch']
  %s0 = inlined_call_operand.hbm [shape: f32[8,40], index: 0, kind: input, shape index: {}]
  %s1 = inlined_call_operand.hbm [shape: f32[3,8,8], index: 1, kind: input, shape index: {}]
  %s2 = inlined_call_operand.hbm [shape: f32[5,8,8], index: 2, kind: input, shape index: {}]
  %s3 = inlined_call_operand.vmem [shape: f32[8,18], index: 3, kind: input, shape index: {}]
  %s4 = inlined_call_operand.hbm [shape: f32[40,64], index: 4, kind: input, shape index: {}]
  %s5 = inlined_call_operand.vmem [shape: f32[8,64], index: 5, kind: input, shape index: {}]
  %s6 = inlined_call_operand.hbm [shape: f32[64,64], index: 6, kind: input, shape index: {}]
  %s7 = inlined_call_operand.vmem [shape: f32[8,64], index: 7, kind: input, shape index: {}]
  %s8 = inlined_call_operand.hbm [shape: f32[40,64], index: 8, kind: input, shape index: {}]
  %s9 = inlined_call_operand.vmem [shape: f32[8,64], index: 9, kind: input, shape index: {}]
  %s10 = inlined_call_operand.hbm [shape: f32[64,64], index: 10, kind: input, shape index: {}]
  %s11 = inlined_call_operand.vmem [shape: f32[8,64], index: 11, kind: input, shape index: {}]
  %s12 = inlined_call_operand.vmem [shape: f32[8,4], index: 12, kind: output, shape index: {}]
  %s13 = sld [smem:[#allocation0]]
  $region86: #{tpu_custom_call.1} parent=0
    _
  %s15 = ssub.s32 1, %s13
  %s16 = scalar_select 0, %s15, %s13
  $region1: #{tpu_custom_call.1} parent=0
    #allocation2 [shape = 'u8[4096]{0}', space=vmem, size = 0x1000, scoped, tag = 'input window, operand 0, single buffered']
    #allocation3 [shape = 's32[1]{0}', space=sflag, size = 0x4, scoped, tag = 'scoped memory for tpu_custom_call.1']
    #allocation4 [shape = 'u8[12288]{0}', space=vmem, size = 0x3000, scoped, tag = 'input window, operand 1, single buffered']
    #allocation5 [shape = 's32[1]{0}', space=sflag, size = 0x4, scoped, tag = 'scoped memory for tpu_custom_call.1']
    #allocation6 [shape = 'u8[20480]{0}', space=vmem, size = 0x5000, scoped, tag = 'input window, operand 2, single buffered']
    #allocation7 [shape = 'u8[20480]{0}', space=vmem, size = 0x5000, scoped, tag = 'input window, operand 4, single buffered']
    #allocation8 [shape = 's32[1]{0}', space=sflag, size = 0x4, scoped, tag = 'scoped memory for tpu_custom_call.1']
    #allocation9 [shape = 'u8[32768]{0}', space=vmem, size = 0x8000, scoped, tag = 'input window, operand 6, single buffered']
    #allocation10 [shape = 'u8[20480]{0}', space=vmem, size = 0x5000, scoped, tag = 'input window, operand 8, single buffered']
    #allocation11 [shape = 's32[1]{0}', space=sflag, size = 0x4, scoped, tag = 'scoped memory for tpu_custom_call.1']
    #allocation12 [shape = 'u8[32768]{0}', space=vmem, size = 0x8000, scoped, tag = 'input window, operand 10, single buffered']
    %17 = vsyncpa [#allocation3], 0
    %18 = vsyncpa [#allocation5], 0
    %19 = vsyncpa [#allocation8], 0
    %20 = vsyncpa [#allocation11], 0
    // Predicated region
    $region2: #{tpu_custom_call.1} parent=1 // pred_check
      _
    $region3: #{tpu_custom_call.1} parent=1 // pred_check_branch
      %22 = sbr.rel (0) target = $region5
    $region4: #{tpu_custom_call.1} parent=1 // pred_region
      %s24 = ssub.s32 128, 128
      %25 = vsyncadd [#allocation3], %s24
      %s27 = sshll.u32 [#allocation2], 4
      %s28 = int_to_ptr.vmem [resolvable:$true] %s27
      %30 = dma.hbm_to_vmem [thread:$0]  %s0, 128, %s28, [#allocation3]
    $region5: #{tpu_custom_call.1} parent=1 // pred_fallthru
      _
    // Predicated region
    $region6: #{tpu_custom_call.1} parent=1 // pred_check
      _
    $region7: #{tpu_custom_call.1} parent=1 // pred_check_branch
      %32 = sbr.rel (0) target = $region9
    $region8: #{tpu_custom_call.1} parent=1 // pred_region
      %s34 = ssub.s32 384, 384
      %35 = vsyncadd [#allocation5], %s34
      %s36 = sshll.u32 [#allocation4], 4
      %s37 = int_to_ptr.vmem [resolvable:$true] %s36
      %42 = dma.hbm_to_vmem [thread:$0]  %s1, 384, %s37, [#allocation5], 128, 128, 8
    $region9: #{tpu_custom_call.1} parent=1 // pred_fallthru
      _
    // Predicated region
    $region10: #{tpu_custom_call.1} parent=1 // pred_check
      _
    $region11: #{tpu_custom_call.1} parent=1 // pred_check_branch
      %44 = sbr.rel (0) target = $region13
    $region12: #{tpu_custom_call.1} parent=1 // pred_region
      %s46 = ssub.s32 640, 640
      %47 = vsyncadd [#allocation5], %s46
      %s48 = sshll.u32 [#allocation6], 4
      %s49 = int_to_ptr.vmem [resolvable:$true] %s48
      %54 = dma.hbm_to_vmem [thread:$0]  %s2, 640, %s49, [#allocation5], 128, 128, 8
    $region13: #{tpu_custom_call.1} parent=1 // pred_fallthru
      _
    // Predicated region
    $region14: #{tpu_custom_call.1} parent=1 // pred_check
      _
    $region15: #{tpu_custom_call.1} parent=1 // pred_check_branch
      %56 = sbr.rel (0) target = $region17
    $region16: #{tpu_custom_call.1} parent=1 // pred_region
      _
    $region17: #{tpu_custom_call.1} parent=1 // pred_fallthru
      _
    // Predicated region
    $region18: #{tpu_custom_call.1} parent=1 // pred_check
      _
    $region19: #{tpu_custom_call.1} parent=1 // pred_check_branch
      %58 = sbr.rel (0) target = $region21
    $region20: #{tpu_custom_call.1} parent=1 // pred_region
      %s60 = ssub.s32 640, 640
      %61 = vsyncadd [#allocation8], %s60
      %s62 = sshll.u32 [#allocation7], 4
      %s63 = int_to_ptr.vmem [resolvable:$true] %s62
      %68 = dma.hbm_to_vmem [thread:$0]  %s4, 640, %s63, [#allocation8], 128, 128, 8
    $region21: #{tpu_custom_call.1} parent=1 // pred_fallthru
      _
    // Predicated region
    $region22: #{tpu_custom_call.1} parent=1 // pred_check
      _
    $region23: #{tpu_custom_call.1} parent=1 // pred_check_branch
      %70 = sbr.rel (0) target = $region25
    $region24: #{tpu_custom_call.1} parent=1 // pred_region
      _
    $region25: #{tpu_custom_call.1} parent=1 // pred_fallthru
      _
    // Predicated region
    $region26: #{tpu_custom_call.1} parent=1 // pred_check
      _
    $region27: #{tpu_custom_call.1} parent=1 // pred_check_branch
      %72 = sbr.rel (0) target = $region29
    $region28: #{tpu_custom_call.1} parent=1 // pred_region
      %s74 = ssub.s32 1024, 1024
      %75 = vsyncadd [#allocation8], %s74
      %s76 = sshll.u32 [#allocation9], 4
      %s77 = int_to_ptr.vmem [resolvable:$true] %s76
      %82 = dma.hbm_to_vmem [thread:$0]  %s6, 1024, %s77, [#allocation8], 128, 128, 8
    $region29: #{tpu_custom_call.1} parent=1 // pred_fallthru
      _
    // Predicated region
    $region30: #{tpu_custom_call.1} parent=1 // pred_check
      _
    $region31: #{tpu_custom_call.1} parent=1 // pred_check_branch
      %84 = sbr.rel (0) target = $region33
    $region32: #{tpu_custom_call.1} parent=1 // pred_region
      _
    $region33: #{tpu_custom_call.1} parent=1 // pred_fallthru
      _
    // Predicated region
    $region34: #{tpu_custom_call.1} parent=1 // pred_check
      _
    $region35: #{tpu_custom_call.1} parent=1 // pred_check_branch
      %86 = sbr.rel (0) target = $region37
    $region36: #{tpu_custom_call.1} parent=1 // pred_region
      %s88 = ssub.s32 640, 640
      %89 = vsyncadd [#allocation11], %s88
      %s90 = sshll.u32 [#allocation10], 4
      %s91 = int_to_ptr.vmem [resolvable:$true] %s90
      %96 = dma.hbm_to_vmem [thread:$0]  %s8, 640, %s91, [#allocation11], 128, 128, 8
    $region37: #{tpu_custom_call.1} parent=1 // pred_fallthru
      _
    // Predicated region
    $region38: #{tpu_custom_call.1} parent=1 // pred_check
      _
    $region39: #{tpu_custom_call.1} parent=1 // pred_check_branch
      %98 = sbr.rel (0) target = $region41
    $region40: #{tpu_custom_call.1} parent=1 // pred_region
      _
    $region41: #{tpu_custom_call.1} parent=1 // pred_fallthru
      _
    // Predicated region
    $region42: #{tpu_custom_call.1} parent=1 // pred_check
      _
    $region43: #{tpu_custom_call.1} parent=1 // pred_check_branch
      %100 = sbr.rel (0) target = $region45
    $region44: #{tpu_custom_call.1} parent=1 // pred_region
      %s102 = ssub.s32 1024, 1024
      %103 = vsyncadd [#allocation11], %s102
      %s104 = sshll.u32 [#allocation12], 4
      %s105 = int_to_ptr.vmem [resolvable:$true] %s104
      %110 = dma.hbm_to_vmem [thread:$0]  %s10, 1024, %s105, [#allocation11], 128, 128, 8
    $region45: #{tpu_custom_call.1} parent=1 // pred_fallthru
      _
    // Predicated region
    $region46: #{tpu_custom_call.1} parent=1 // pred_check
      _
    $region47: #{tpu_custom_call.1} parent=1 // pred_check_branch
      %112 = sbr.rel (0) target = $region49
    $region48: #{tpu_custom_call.1} parent=1 // pred_region
      _
    $region49: #{tpu_custom_call.1} parent=1 // pred_fallthru
      _
    // Predicated region
    $region50: #{tpu_custom_call.1} parent=1 // pred_check
      _
    $region51: #{tpu_custom_call.1} parent=1 // pred_check_branch
      %114 = sbr.rel (0) target = $region53
    $region52: #{tpu_custom_call.1} parent=1 // pred_region
      %115 = dma.done [#allocation3], 128
    $region53: #{tpu_custom_call.1} parent=1 // pred_fallthru
      _
    // Predicated region
    $region54: #{tpu_custom_call.1} parent=1 // pred_check
      _
    $region55: #{tpu_custom_call.1} parent=1 // pred_check_branch
      %117 = sbr.rel (0) target = $region57
    $region56: #{tpu_custom_call.1} parent=1 // pred_region
      %118 = dma.done [#allocation5], 384
    $region57: #{tpu_custom_call.1} parent=1 // pred_fallthru
      _
    // Predicated region
    $region58: #{tpu_custom_call.1} parent=1 // pred_check
      _
    $region59: #{tpu_custom_call.1} parent=1 // pred_check_branch
      %120 = sbr.rel (0) target = $region61
    $region60: #{tpu_custom_call.1} parent=1 // pred_region
      %121 = dma.done [#allocation5], 640
    $region61: #{tpu_custom_call.1} parent=1 // pred_fallthru
      _
    // Predicated region
    $region62: #{tpu_custom_call.1} parent=1 // pred_check
      _
    $region63: #{tpu_custom_call.1} parent=1 // pred_check_branch
      %123 = sbr.rel (0) target = $region65
    $region64: #{tpu_custom_call.1} parent=1 // pred_region
      %124 = dma.done [#allocation8], 640
    $region65: #{tpu_custom_call.1} parent=1 // pred_fallthru
      _
    // Predicated region
    $region66: #{tpu_custom_call.1} parent=1 // pred_check
      _
    $region67: #{tpu_custom_call.1} parent=1 // pred_check_branch
      %126 = sbr.rel (0) target = $region69
    $region68: #{tpu_custom_call.1} parent=1 // pred_region
      %127 = dma.done [#allocation8], 1024
    $region69: #{tpu_custom_call.1} parent=1 // pred_fallthru
      _
    // Predicated region
    $region70: #{tpu_custom_call.1} parent=1 // pred_check
      _
    $region71: #{tpu_custom_call.1} parent=1 // pred_check_branch
      %129 = sbr.rel (0) target = $region73
    $region72: #{tpu_custom_call.1} parent=1 // pred_region
      %130 = dma.done [#allocation11], 640
    $region73: #{tpu_custom_call.1} parent=1 // pred_fallthru
      _
    // Predicated region
    $region74: #{tpu_custom_call.1} parent=1 // pred_check
      _
    $region75: #{tpu_custom_call.1} parent=1 // pred_check_branch
      %132 = sbr.rel (0) target = $region77
    $region76: #{tpu_custom_call.1} parent=1 // pred_region
      %133 = dma.done [#allocation11], 1024
    $region77: #{tpu_custom_call.1} parent=1 // pred_fallthru
      _
    %v134 = vld [vmem:[#allocation2] sm:$0xff]
    %vm135 = vcmask 326656
    %v136 = vsel %vm135, %v134, 0.0
    %137 = vadd.xlane.f32.xlu0 %v136
    %v138 = vpop.xlane.xlu0 %137
    %v139 = vmul.f32 %v134, %v134
    %v140 = vsel %vm135, %v139, 0.0
    %141 = vadd.xlane.f32.xlu0 %v140
    %v142 = vpop.xlane.xlu0 %141
    %v143 = vld [vmem:[%s3] sm:$0xff]
    %v144 = vld [vmem:[%s7] sm:$0xff]
    %v145 = vld [vmem:[#allocation7] sm:$0xff]
    %v146 = vld [vmem:[#allocation7 + $0x8] sm:$0xff]
    %v147 = vld [vmem:[#allocation7 + $0x10] sm:$0xff]
    %v148 = vld [vmem:[#allocation7 + $0x18] sm:$0xff]
    %v149 = vld [vmem:[#allocation7 + $0x20] sm:$0xff]
    %v151 = vsel %vm135, %v134, 0
    %153 = vmatprep.subr.mxu0 0.0
    %154 = vmatpush1.msra.mxu0 %v145
    %155 = vmatprep.subr.mxu0 0.0
    %156 = vmatpush1.msra.mxu0 %v146
    %157 = vmatprep.subr.mxu0 0.0
    %158 = vmatpush1.msra.mxu0 %v147
    %159 = vmatprep.subr.mxu0 0.0
    %160 = vmatpush1.msra.mxu0 %v148
    %161 = vmatprep.subr.mxu0 0.0
    %162 = vmatpush1.msra.mxu0 %v149
    %163 = vmatprep.subr.mxu0 0.0
    %164 = vmatpush1.msra.mxu0 0.0
    %165 = vmatprep.subr.mxu0 0.0
    %166 = vmatpush1.msra.mxu0 0.0
    %167 = vmatprep.subr.mxu0 0.0
    %168 = vmatpush1.msra.mxu0 0.0
    %169 = vmatprep.subr.mxu0 0.0
    %170 = vmatpush1.msra.mxu0 0.0
    %171 = vmatprep.subr.mxu0 0.0
    %172 = vmatpush1.msra.mxu0 0.0
    %173 = vmatprep.subr.mxu0 0.0
    %174 = vmatpush1.msra.mxu0 0.0
    %175 = vmatprep.subr.mxu0 0.0
    %176 = vmatpush1.msra.mxu0 0.0
    %177 = vmatprep.subr.mxu0 0.0
    %178 = vmatpush1.msra.mxu0 0.0
    %179 = vmatprep.subr.mxu0 0.0
    %180 = vmatpush1.msra.mxu0 0.0
    %181 = vmatprep.subr.mxu0 0.0
    %182 = vmatpush1.msra.mxu0 0.0
    %183 = vmatprep.subr.mxu0 0.0
    %184 = vmatpush1.msra.mxu0 0.0
    %185 = vmatprep.subr.mxu0 0.0
    %186 = vmatpush1.msra.mxu0 0.0
    %187 = vmatprep.subr.mxu0 0.0
    %188 = vmatpush1.msra.mxu0 0.0
    %189 = vmatprep.subr.mxu0 0.0
    %190 = vmatpush1.msra.mxu0 0.0
    %191 = vmatprep.subr.mxu0 0.0
    %192 = vmatpush1.msra.mxu0 0.0
    %193 = vmatprep.subr.mxu0 0.0
    %194 = vmatpush1.msra.mxu0 0.0
    %195 = vmatprep.subr.mxu0 0.0
    %196 = vmatpush1.msra.mxu0 0.0
    %197 = vmatprep.subr.mxu0 0.0
    %198 = vmatpush1.msra.mxu0 0.0
    %199 = vmatprep.subr.mxu0 0.0
    %200 = vmatpush1.msra.mxu0 0.0
    %201 = vmatprep.subr.mxu0 0.0
    %202 = vmatpush1.msra.mxu0 0.0
    %203 = vmatprep.subr.mxu0 0.0
    %204 = vmatpush1.msra.mxu0 0.0
    %205 = vmatprep.subr.mxu0 0.0
    %206 = vmatpush1.msra.mxu0 0.0
    %207 = vmatprep.subr.mxu0 0.0
    %208 = vmatpush1.msra.mxu0 0.0
    %209 = vmatprep.subr.mxu0 0.0
    %210 = vmatpush1.msra.mxu0 0.0
    %211 = vmatprep.subr.mxu0 0.0
    %212 = vmatpush1.msra.mxu0 0.0
    %213 = vmatprep.subr.mxu0 0.0
    %214 = vmatpush1.msra.mxu0 0.0
    %215 = vmatprep.subr.mxu0 0.0
    %216 = vmatpush1.msra.mxu0 0.0
    %217 = vmatprep.mubr.f32.mxu0 0.0
    %218 = vmatmul.mubr.f32.gmra.mrb[0].mxu0 %v151
    %v219 = vpop.f32.mrb[0].mxu0
    %v220 = vadd.f32 0.0, %v219
    %v221 = vpop.f32.mrb[0].mxu0
    %222 = vdwg.mxu0
    %v223 = vld [vmem:[#allocation4] sm:$0xff]
    %s224 = scalar_lea.vmem [#allocation4], 8
    %v225 = vld [vmem:[%s224] sm:$0xff]
    %s226 = scalar_lea.vmem [#allocation4], 16
    %v227 = vld [vmem:[%s226] sm:$0xff]
    %vm228 = vcmask 64512
    %v229 = vsel %vm228, %v223, 0.0
    %230 = vadd.xlane.f32.xlu0 %v229
    %v231 = vpop.xlane.xlu0 %230
    %v232 = vsel %vm228, %v225, 0.0
    %233 = vadd.xlane.f32.xlu0 %v232
    %v234 = vpop.xlane.xlu0 %233
    %v235 = vsel %vm228, %v227, 0.0
    %236 = vadd.xlane.f32.xlu0 %v235
    %v237 = vpop.xlane.xlu0 %236
    %v238 = vadd.f32 %v138, %v231
    %v239 = vadd.f32 %v138, %v234
    %v240 = vadd.f32 %v138, %v237
    %v241 = vmul.f32 %v238, 0.020833334
    %v242 = vmul.f32 %v239, 0.020833334
    %v243 = vmul.f32 %v240, 0.020833334
    %v244 = vmul.f32 %v223, %v223
    %v245 = vmul.f32 %v225, %v225
    %v246 = vmul.f32 %v227, %v227
    %v247 = vsel %vm228, %v244, 0.0
    %248 = vadd.xlane.f32.xlu0 %v247
    %v249 = vpop.xlane.xlu0 %248
    %v250 = vsel %vm228, %v245, 0.0
    %251 = vadd.xlane.f32.xlu0 %v250
    %v252 = vpop.xlane.xlu0 %251
    %v253 = vsel %vm228, %v246, 0.0
    %254 = vadd.xlane.f32.xlu0 %v253
    %v255 = vpop.xlane.xlu0 %254
    %v256 = vadd.f32 %v142, %v249
    %v257 = vadd.f32 %v142, %v252
    %v258 = vadd.f32 %v142, %v255
    %v259 = vmul.f32 %v256, 0.020833334
    %v260 = vmul.f32 %v257, 0.020833334
    %v261 = vmul.f32 %v258, 0.020833334
    %v262 = vmul.f32 %v241, %v241
    %v263 = vmul.f32 %v242, %v242
    %v264 = vmul.f32 %v243, %v243
    %v265 = vsub.f32 %v259, %v262
    %v266 = vsub.f32 %v260, %v263
    %v267 = vsub.f32 %v261, %v264
    %v268 = vmax.f32 %v265, 0.0
    %v269 = vmax.f32 %v266, 0.0
    %v270 = vmax.f32 %v267, 0.0
    %v271 = vadd.f32 %v268, 1e-05
    %v272 = vadd.f32 %v269, 1e-05
    %v273 = vadd.f32 %v270, 1e-05
    %v274 = vrsqrt.pop %v271
    %v275 = vrsqrt.pop %v272
    %v276 = vrsqrt.pop %v273
    %v277 = vld [vmem:[%s5] sm:$0xff]
    %v279 = vsel %vm228, %v223, 0
    %v282 = vsel %vm228, %v225, 0
    %v285 = vsel %vm228, %v227, 0
    %287 = vmatprep.subr.mxu0 0.0
    %288 = vmatpush1.msra.mxu0 %v277
    %289 = vmatprep.subr.mxu0 0.0
    %290 = vmatpush1.msra.mxu0 0.0
    %291 = vmatprep.subr.mxu0 0.0
    %292 = vmatpush1.msra.mxu0 0.0
    %293 = vmatprep.subr.mxu0 0.0
    %294 = vmatpush1.msra.mxu0 0.0
    %295 = vmatprep.subr.mxu0 0.0
    %296 = vmatpush1.msra.mxu0 0.0
    %297 = vmatprep.subr.mxu0 0.0
    %298 = vmatpush1.msra.mxu0 0.0
    %299 = vmatprep.subr.mxu0 0.0
    %300 = vmatpush1.msra.mxu0 0.0
    %301 = vmatprep.subr.mxu0 0.0
    %302 = vmatpush1.msra.mxu0 0.0
    %303 = vmatprep.subr.mxu0 0.0
    %304 = vmatpush1.msra.mxu0 0.0
    %305 = vmatprep.subr.mxu0 0.0
    %306 = vmatpush1.msra.mxu0 0.0
    %307 = vmatprep.subr.mxu0 0.0
    %308 = vmatpush1.msra.mxu0 0.0
    %309 = vmatprep.subr.mxu0 0.0
    %310 = vmatpush1.msra.mxu0 0.0
    %311 = vmatprep.subr.mxu0 0.0
    %312 = vmatpush1.msra.mxu0 0.0
    %313 = vmatprep.subr.mxu0 0.0
    %314 = vmatpush1.msra.mxu0 0.0
    %315 = vmatprep.subr.mxu0 0.0
    %316 = vmatpush1.msra.mxu0 0.0
    %317 = vmatprep.subr.mxu0 0.0
    %318 = vmatpush1.msra.mxu0 0.0
    %319 = vmatprep.subr.mxu0 0.0
    %320 = vmatpush1.msra.mxu0 0.0
    %321 = vmatprep.subr.mxu0 0.0
    %322 = vmatpush1.msra.mxu0 0.0
    %323 = vmatprep.subr.mxu0 0.0
    %324 = vmatpush1.msra.mxu0 0.0
    %325 = vmatprep.subr.mxu0 0.0
    %326 = vmatpush1.msra.mxu0 0.0
    %327 = vmatprep.subr.mxu0 0.0
    %328 = vmatpush1.msra.mxu0 0.0
    %329 = vmatprep.subr.mxu0 0.0
    %330 = vmatpush1.msra.mxu0 0.0
    %331 = vmatprep.subr.mxu0 0.0
    %332 = vmatpush1.msra.mxu0 0.0
    %333 = vmatprep.subr.mxu0 0.0
    %334 = vmatpush1.msra.mxu0 0.0
    %335 = vmatprep.subr.mxu0 0.0
    %336 = vmatpush1.msra.mxu0 0.0
    %337 = vmatprep.subr.mxu0 0.0
    %338 = vmatpush1.msra.mxu0 0.0
    %339 = vmatprep.subr.mxu0 0.0
    %340 = vmatpush1.msra.mxu0 0.0
    %341 = vmatprep.subr.mxu0 0.0
    %342 = vmatpush1.msra.mxu0 0.0
    %343 = vmatprep.subr.mxu0 0.0
    %344 = vmatpush1.msra.mxu0 0.0
    %345 = vmatprep.subr.mxu0 0.0
    %346 = vmatpush1.msra.mxu0 0.0
    %347 = vmatprep.subr.mxu0 0.0
    %348 = vmatpush1.msra.mxu0 0.0
    %349 = vmatprep.subr.mxu0 0.0
    %350 = vmatpush1.msra.mxu0 0.0
    %351 = vmatprep.mubr.f32.mxu0 0.0
    %352 = vmatmul.mubr.f32.gmra.mrb[0].mxu0 %v279
    %v353 = vpop.f32.mrb[0].mxu0
    %v354 = vadd.f32 0.0, %v353
    %v355 = vpop.f32.mrb[0].mxu0
    %356 = vmatprep.mubr.f32.mxu0 0.0
    %357 = vmatmul.mubr.f32.gmra.mrb[0].mxu0 %v282
    %v358 = vpop.f32.mrb[0].mxu0
    %v359 = vadd.f32 0.0, %v358
    %v360 = vpop.f32.mrb[0].mxu0
    %361 = vmatprep.mubr.f32.mxu0 0.0
    %362 = vmatmul.mubr.f32.gmra.mrb[0].mxu0 %v285
    %v363 = vpop.f32.mrb[0].mxu0
    %v364 = vadd.f32 0.0, %v363
    %v365 = vpop.f32.mrb[0].mxu0
    %366 = vdwg.mxu0
    %v367 = vadd.f32 %v220, %v354
    %v368 = vadd.f32 %v220, %v359
    %v369 = vadd.f32 %v220, %v364
    %371 = vset.pattern.permute.xlu0 0
    %372 = vperm.xlu0 %371, %v274
    %v373 = vpop.permute.xlu0 %372
    %376 = vset.pattern.permute.xlu0 0
    %377 = vperm.xlu0 %376, %v275
    %v378 = vpop.permute.xlu0 %377
    %381 = vset.pattern.permute.xlu0 0
    %382 = vperm.xlu0 %381, %v276
    %v383 = vpop.permute.xlu0 %382
    %v385 = vmul.f32 %v373, %v367
    %v386 = vmul.f32 %v378, %v368
    %v387 = vmul.f32 %v383, %v369
    %v388 = vmul.f32 %v274, %v241
    %v389 = vmul.f32 %v275, %v242
    %v390 = vmul.f32 %v276, %v243
    %392 = vset.pattern.permute.xlu0 0
    %393 = vperm.xlu0 %392, %v388
    %v394 = vpop.permute.xlu0 %393
    %397 = vset.pattern.permute.xlu0 0
    %398 = vperm.xlu0 %397, %v389
    %v399 = vpop.permute.xlu0 %398
    %402 = vset.pattern.permute.xlu0 0
    %403 = vperm.xlu0 %402, %v390
    %v404 = vpop.permute.xlu0 %403
    %v406 = vlaneseq
    %v407 = vshrl.u32 %v406, 7
    %v408 = vsub.s32 0, %v407
    %v409 = vrot.slane %v144, %v408
    %v410 = vmul.f32 %v394, %v409
    %v411 = vmul.f32 %v399, %v409
    %v412 = vmul.f32 %v404, %v409
    %v413 = vsub.f32 %v385, %v410
    %v414 = vsub.f32 %v386, %v411
    %v415 = vsub.f32 %v387, %v412
    %v416 = vlaneseq
    %v417 = vshrl.u32 %v416, 7
    %v418 = vsub.s32 1, %v417
    %v419 = vrot.slane %v144, %v418
    %v420 = vadd.f32 %v413, %v419
    %v421 = vadd.f32 %v414, %v419
    %v422 = vadd.f32 %v415, %v419
    %v423 = vmul.f32 %v420, 0.5
    %v424 = vmul.f32 %v421, 0.5
    %v425 = vmul.f32 %v422, 0.5
    %v426 = vmul.f32 %v420, 0.70710677
    %v427 = vmul.f32 %v421, 0.70710677
    %v428 = vmul.f32 %v422, 0.70710677
    %v429 = vand.u32 2147483647, %v426
    %v430 = vand.u32 2147483647, %v427
    %v431 = vand.u32 2147483647, %v428
    %v432 = vmul.f32 %v429, 0.3275911
    %v433 = vmul.f32 %v430, 0.3275911
    %v434 = vmul.f32 %v431, 0.3275911
    %v435 = vadd.f32 %v432, 1.0
    %v436 = vadd.f32 %v433, 1.0
    %v437 = vadd.f32 %v434, 1.0
    %v438 = vrcp.pop %v435
    %v439 = vrcp.pop %v436
    %v440 = vrcp.pop %v437
    %v441 = vmul.f32 %v438, 1.0614054
    %v442 = vmul.f32 %v439, 1.0614054
    %v443 = vmul.f32 %v440, 1.0614054
    %v444 = vadd.f32 %v441, -1.4531521
    %v445 = vadd.f32 %v442, -1.4531521
    %v446 = vadd.f32 %v443, -1.4531521
    %v447 = vmul.f32 %v444, %v438
    %v448 = vmul.f32 %v445, %v439
    %v449 = vmul.f32 %v446, %v440
    %v450 = vadd.f32 %v447, 1.4214138
    %v451 = vadd.f32 %v448, 1.4214138
    %v452 = vadd.f32 %v449, 1.4214138
    %v453 = vmul.f32 %v450, %v438
    %v454 = vmul.f32 %v451, %v439
    %v455 = vmul.f32 %v452, %v440
    %v456 = vadd.f32 %v453, -0.28449672
    %v457 = vadd.f32 %v454, -0.28449672
    %v458 = vadd.f32 %v455, -0.28449672
    %v459 = vmul.f32 %v456, %v438
    %v460 = vmul.f32 %v457, %v439
    %v461 = vmul.f32 %v458, %v440
    %v462 = vadd.f32 %v459, 0.2548296
    %v463 = vadd.f32 %v460, 0.2548296
    %v464 = vadd.f32 %v461, 0.2548296
    %v465 = vmul.f32 %v462, %v438
    %v466 = vmul.f32 %v463, %v439
    %v467 = vmul.f32 %v464, %v440
    %v468 = vsub.f32 0.0, %v429
    %v469 = vsub.f32 0.0, %v430
    %v470 = vsub.f32 0.0, %v431
    %v471 = vmul.f32 %v468, %v429
    %v472 = vmul.f32 %v469, %v430
    %v473 = vmul.f32 %v470, %v431
    %v474 = vmul.f32 %v471, 1.442695
    %v475 = vpow.pop %v474
    %v476 = vmul.f32 %v472, 1.442695
    %v477 = vpow.pop %v476
    %v478 = vmul.f32 %v473, 1.442695
    %v479 = vpow.pop %v478
    %v480 = vmul.f32 %v465, %v475
    %v481 = vmul.f32 %v466, %v477
    %v482 = vmul.f32 %v467, %v479
    %v483 = vsub.f32 1.0, %v480
    %v484 = vsub.f32 1.0, %v481
    %v485 = vsub.f32 1.0, %v482
    %vm486 = vcmp.ge.f32.partialorder %v426, 0.0
    %vm487 = vcmp.ge.f32.partialorder %v427, 0.0
    %vm488 = vcmp.ge.f32.partialorder %v428, 0.0
    %v489 = vsub.f32 0.0, %v483
    %v490 = vsub.f32 0.0, %v484
    %v491 = vsub.f32 0.0, %v485
    %v492 = vsel %vm486, %v483, %v489
    %v493 = vsel %vm487, %v484, %v490
    %v494 = vsel %vm488, %v485, %v491
    %v495 = vadd.f32 %v492, 1.0
    %v496 = vadd.f32 %v493, 1.0
    %v497 = vadd.f32 %v494, 1.0
    %v498 = vmul.f32 %v423, %v495
    %v499 = vmul.f32 %v424, %v496
    %v500 = vmul.f32 %v425, %v497
    %vm501 = vcmask 523264
    %v502 = vsel %vm501, %v498, 0.0
    %503 = vadd.xlane.f32.xlu0 %v502
    %v504 = vpop.xlane.xlu0 %503
    %v505 = vsel %vm501, %v499, 0.0
    %506 = vadd.xlane.f32.xlu0 %v505
    %v507 = vpop.xlane.xlu0 %506
    %v508 = vsel %vm501, %v500, 0.0
    %509 = vadd.xlane.f32.xlu0 %v508
    %v510 = vpop.xlane.xlu0 %509
    %v511 = vrcp.pop 64.0
    %v512 = vmul.f32 %v504, %v511
    %v513 = vmul.f32 %v507, %v511
    %v514 = vmul.f32 %v510, %v511
    %v515 = vsub.f32 %v498, %v512
    %v516 = vsub.f32 %v499, %v513
    %v517 = vsub.f32 %v500, %v514
    %v518 = vmul.f32 %v515, %v515
    %v519 = vmul.f32 %v516, %v516
    %v520 = vmul.f32 %v517, %v517
    %v521 = vsel %vm501, %v518, 0.0
    %522 = vadd.xlane.f32.xlu0 %v521
    %v523 = vpop.xlane.xlu0 %522
    %v524 = vsel %vm501, %v519, 0.0
    %525 = vadd.xlane.f32.xlu0 %v524
    %v526 = vpop.xlane.xlu0 %525
    %v527 = vsel %vm501, %v520, 0.0
    %528 = vadd.xlane.f32.xlu0 %v527
    %v529 = vpop.xlane.xlu0 %528
    %v530 = vmul.f32 %v523, %v511
    %v531 = vmul.f32 %v526, %v511
    %v532 = vmul.f32 %v529, %v511
    %v533 = vadd.f32 %v530, 1e-05
    %v534 = vadd.f32 %v531, 1e-05
    %v535 = vadd.f32 %v532, 1e-05
    %v536 = vrsqrt.pop %v533
    %v537 = vrsqrt.pop %v534
    %v538 = vrsqrt.pop %v535
    %v539 = vmul.f32 %v515, %v536
    %v540 = vmul.f32 %v516, %v537
    %v541 = vmul.f32 %v517, %v538
    %v542 = vld [vmem:[#allocation9] sm:$0xff]
    %v543 = vld [vmem:[#allocation9 + $0x8] sm:$0xff]
    %v544 = vld [vmem:[#allocation9 + $0x10] sm:$0xff]
    %v545 = vld [vmem:[#allocation9 + $0x18] sm:$0xff]
    %v546 = vld [vmem:[#allocation9 + $0x20] sm:$0xff]
    %v547 = vld [vmem:[#allocation9 + $0x28] sm:$0xff]
    %v548 = vld [vmem:[#allocation9 + $0x30] sm:$0xff]
    %v549 = vld [vmem:[#allocation9 + $0x38] sm:$0xff]
    %v550 = vlaneseq
    %v551 = vshrl.u32 %v550, 7
    %v552 = vsub.s32 2, %v551
    %v553 = vrot.slane %v144, %v552
    %v555 = vsel %vm501, %v539, 0
    %v558 = vsel %vm501, %v540, 0
    %v561 = vsel %vm501, %v541, 0
    %563 = vmatprep.subr.mxu0 0.0
    %564 = vmatpush1.msra.mxu0 %v542
    %565 = vmatprep.subr.mxu0 0.0
    %566 = vmatpush1.msra.mxu0 %v543
    %567 = vmatprep.subr.mxu0 0.0
    %568 = vmatpush1.msra.mxu0 %v544
    %569 = vmatprep.subr.mxu0 0.0
    %570 = vmatpush1.msra.mxu0 %v545
    %571 = vmatprep.subr.mxu0 0.0
    %572 = vmatpush1.msra.mxu0 %v546
    %573 = vmatprep.subr.mxu0 0.0
    %574 = vmatpush1.msra.mxu0 %v547
    %575 = vmatprep.subr.mxu0 0.0
    %576 = vmatpush1.msra.mxu0 %v548
    %577 = vmatprep.subr.mxu0 0.0
    %578 = vmatpush1.msra.mxu0 %v549
    %579 = vmatprep.subr.mxu0 0.0
    %580 = vmatpush1.msra.mxu0 0.0
    %581 = vmatprep.subr.mxu0 0.0
    %582 = vmatpush1.msra.mxu0 0.0
    %583 = vmatprep.subr.mxu0 0.0
    %584 = vmatpush1.msra.mxu0 0.0
    %585 = vmatprep.subr.mxu0 0.0
    %586 = vmatpush1.msra.mxu0 0.0
    %587 = vmatprep.subr.mxu0 0.0
    %588 = vmatpush1.msra.mxu0 0.0
    %589 = vmatprep.subr.mxu0 0.0
    %590 = vmatpush1.msra.mxu0 0.0
    %591 = vmatprep.subr.mxu0 0.0
    %592 = vmatpush1.msra.mxu0 0.0
    %593 = vmatprep.subr.mxu0 0.0
    %594 = vmatpush1.msra.mxu0 0.0
    %595 = vmatprep.subr.mxu0 0.0
    %596 = vmatpush1.msra.mxu0 0.0
    %597 = vmatprep.subr.mxu0 0.0
    %598 = vmatpush1.msra.mxu0 0.0
    %599 = vmatprep.subr.mxu0 0.0
    %600 = vmatpush1.msra.mxu0 0.0
    %601 = vmatprep.subr.mxu0 0.0
    %602 = vmatpush1.msra.mxu0 0.0
    %603 = vmatprep.subr.mxu0 0.0
    %604 = vmatpush1.msra.mxu0 0.0
    %605 = vmatprep.subr.mxu0 0.0
    %606 = vmatpush1.msra.mxu0 0.0
    %607 = vmatprep.subr.mxu0 0.0
    %608 = vmatpush1.msra.mxu0 0.0
    %609 = vmatprep.subr.mxu0 0.0
    %610 = vmatpush1.msra.mxu0 0.0
    %611 = vmatprep.subr.mxu0 0.0
    %612 = vmatpush1.msra.mxu0 0.0
    %613 = vmatprep.subr.mxu0 0.0
    %614 = vmatpush1.msra.mxu0 0.0
    %615 = vmatprep.subr.mxu0 0.0
    %616 = vmatpush1.msra.mxu0 0.0
    %617 = vmatprep.subr.mxu0 0.0
    %618 = vmatpush1.msra.mxu0 0.0
    %619 = vmatprep.subr.mxu0 0.0
    %620 = vmatpush1.msra.mxu0 0.0
    %621 = vmatprep.subr.mxu0 0.0
    %622 = vmatpush1.msra.mxu0 0.0
    %623 = vmatprep.subr.mxu0 0.0
    %624 = vmatpush1.msra.mxu0 0.0
    %625 = vmatprep.subr.mxu0 0.0
    %626 = vmatpush1.msra.mxu0 0.0
    %627 = vmatprep.mubr.f32.mxu0 0.0
    %628 = vmatmul.mubr.f32.gmra.mrb[0].mxu0 %v555
    %v629 = vpop.f32.mrb[0].mxu0
    %v630 = vadd.f32 %v553, %v629
    %v631 = vpop.f32.mrb[0].mxu0
    %632 = vmatprep.mubr.f32.mxu0 0.0
    %633 = vmatmul.mubr.f32.gmra.mrb[0].mxu0 %v558
    %v634 = vpop.f32.mrb[0].mxu0
    %v635 = vadd.f32 %v553, %v634
    %v636 = vpop.f32.mrb[0].mxu0
    %637 = vmatprep.mubr.f32.mxu0 0.0
    %638 = vmatmul.mubr.f32.gmra.mrb[0].mxu0 %v561
    %v639 = vpop.f32.mrb[0].mxu0
    %v640 = vadd.f32 %v553, %v639
    %v641 = vpop.f32.mrb[0].mxu0
    %642 = vdwg.mxu0
    %v643 = vmul.f32 %v630, 0.5
    %v644 = vmul.f32 %v635, 0.5
    %v645 = vmul.f32 %v640, 0.5
    %v646 = vmul.f32 %v630, 0.70710677
    %v647 = vmul.f32 %v635, 0.70710677
    %v648 = vmul.f32 %v640, 0.70710677
    %v649 = vand.u32 2147483647, %v646
    %v650 = vand.u32 2147483647, %v647
    %v651 = vand.u32 2147483647, %v648
    %v652 = vmul.f32 %v649, 0.3275911
    %v653 = vmul.f32 %v650, 0.3275911
    %v654 = vmul.f32 %v651, 0.3275911
    %v655 = vadd.f32 %v652, 1.0
    %v656 = vadd.f32 %v653, 1.0
    %v657 = vadd.f32 %v654, 1.0
    %v658 = vrcp.pop %v655
    %v659 = vrcp.pop %v656
    %v660 = vrcp.pop %v657
    %v661 = vmul.f32 %v658, 1.0614054
    %v662 = vmul.f32 %v659, 1.0614054
    %v663 = vmul.f32 %v660, 1.0614054
    %v664 = vadd.f32 %v661, -1.4531521
    %v665 = vadd.f32 %v662, -1.4531521
    %v666 = vadd.f32 %v663, -1.4531521
    %v667 = vmul.f32 %v664, %v658
    %v668 = vmul.f32 %v665, %v659
    %v669 = vmul.f32 %v666, %v660
    %v670 = vadd.f32 %v667, 1.4214138
    %v671 = vadd.f32 %v668, 1.4214138
    %v672 = vadd.f32 %v669, 1.4214138
    %v673 = vmul.f32 %v670, %v658
    %v674 = vmul.f32 %v671, %v659
    %v675 = vmul.f32 %v672, %v660
    %v676 = vadd.f32 %v673, -0.28449672
    %v677 = vadd.f32 %v674, -0.28449672
    %v678 = vadd.f32 %v675, -0.28449672
    %v679 = vmul.f32 %v676, %v658
    %v680 = vmul.f32 %v677, %v659
    %v681 = vmul.f32 %v678, %v660
    %v682 = vadd.f32 %v679, 0.2548296
    %v683 = vadd.f32 %v680, 0.2548296
    %v684 = vadd.f32 %v681, 0.2548296
    %v685 = vmul.f32 %v682, %v658
    %v686 = vmul.f32 %v683, %v659
    %v687 = vmul.f32 %v684, %v660
    %v688 = vsub.f32 0.0, %v649
    %v689 = vsub.f32 0.0, %v650
    %v690 = vsub.f32 0.0, %v651
    %v691 = vmul.f32 %v688, %v649
    %v692 = vmul.f32 %v689, %v650
    %v693 = vmul.f32 %v690, %v651
    %v694 = vmul.f32 %v691, 1.442695
    %v695 = vpow.pop %v694
    %v696 = vmul.f32 %v692, 1.442695
    %v697 = vpow.pop %v696
    %v698 = vmul.f32 %v693, 1.442695
    %v699 = vpow.pop %v698
    %v700 = vmul.f32 %v685, %v695
    %v701 = vmul.f32 %v686, %v697
    %v702 = vmul.f32 %v687, %v699
    %v703 = vsub.f32 1.0, %v700
    %v704 = vsub.f32 1.0, %v701
    %v705 = vsub.f32 1.0, %v702
    %vm706 = vcmp.ge.f32.partialorder %v646, 0.0
    %vm707 = vcmp.ge.f32.partialorder %v647, 0.0
    %vm708 = vcmp.ge.f32.partialorder %v648, 0.0
    %v709 = vsub.f32 0.0, %v703
    %v710 = vsub.f32 0.0, %v704
    %v711 = vsub.f32 0.0, %v705
    %v712 = vsel %vm706, %v703, %v709
    %v713 = vsel %vm707, %v704, %v710
    %v714 = vsel %vm708, %v705, %v711
    %v715 = vadd.f32 %v712, 1.0
    %v716 = vadd.f32 %v713, 1.0
    %v717 = vadd.f32 %v714, 1.0
    %v718 = vmul.f32 %v643, %v715
    %v719 = vmul.f32 %v644, %v716
    %v720 = vmul.f32 %v645, %v717
    %v721 = vsel %vm501, %v718, 0.0
    %722 = vadd.xlane.f32.xlu0 %v721
    %v723 = vpop.xlane.xlu0 %722
    %v724 = vsel %vm501, %v719, 0.0
    %725 = vadd.xlane.f32.xlu0 %v724
    %v726 = vpop.xlane.xlu0 %725
    %v727 = vsel %vm501, %v720, 0.0
    %728 = vadd.xlane.f32.xlu0 %v727
    %v729 = vpop.xlane.xlu0 %728
    %v730 = vmul.f32 %v723, %v511
    %v731 = vmul.f32 %v726, %v511
    %v732 = vmul.f32 %v729, %v511
    %v733 = vsub.f32 %v718, %v730
    %v734 = vsub.f32 %v719, %v731
    %v735 = vsub.f32 %v720, %v732
    %v736 = vmul.f32 %v733, %v733
    %v737 = vmul.f32 %v734, %v734
    %v738 = vmul.f32 %v735, %v735
    %v739 = vsel %vm501, %v736, 0.0
    %740 = vadd.xlane.f32.xlu0 %v739
    %v741 = vpop.xlane.xlu0 %740
    %v742 = vsel %vm501, %v737, 0.0
    %743 = vadd.xlane.f32.xlu0 %v742
    %v744 = vpop.xlane.xlu0 %743
    %v745 = vsel %vm501, %v738, 0.0
    %746 = vadd.xlane.f32.xlu0 %v745
    %v747 = vpop.xlane.xlu0 %746
    %v748 = vmul.f32 %v741, %v511
    %v749 = vmul.f32 %v744, %v511
    %v750 = vmul.f32 %v747, %v511
    %v751 = vadd.f32 %v748, 1e-05
    %v752 = vadd.f32 %v749, 1e-05
    %v753 = vadd.f32 %v750, 1e-05
    %v754 = vrsqrt.pop %v751
    %v755 = vrsqrt.pop %v752
    %v756 = vrsqrt.pop %v753
    %v757 = vmul.f32 %v733, %v754
    %v758 = vmul.f32 %v734, %v755
    %v759 = vmul.f32 %v735, %v756
    %v760 = vlaneseq
    %v761 = vshrl.u32 %v760, 7
    %v762 = vsub.s32 3, %v761
    %v763 = vrot.slane %v144, %v762
    %v764 = vmul.f32 %v757, %v763
    %v765 = vmul.f32 %v758, %v763
    %v766 = vmul.f32 %v759, %v763
    %v767 = vsel %vm501, %v764, 0.0
    %768 = vadd.xlane.f32.xlu0 %v767
    %v769 = vpop.xlane.xlu0 %768
    %v770 = vsel %vm501, %v765, 0.0
    %771 = vadd.xlane.f32.xlu0 %v770
    %v772 = vpop.xlane.xlu0 %771
    %v773 = vsel %vm501, %v766, 0.0
    %774 = vadd.xlane.f32.xlu0 %v773
    %v775 = vpop.xlane.xlu0 %774
    %v776 = vlaneseq
    %v777 = vshrl.u32 %v776, 7
    %v778 = vsub.s32 4, %v777
    %v779 = vrot.slane %v144, %v778
    %v780 = vadd.f32 %v769, %v779
    %v781 = vadd.f32 %v772, %v779
    %v782 = vadd.f32 %v775, %v779
    %v783 = vmul.f32 %v780, %v143
    %v784 = vadd.f32 %v783, 0.0
    %786 = vrot.lane.b32.xlu0 %v143, 125
    %v787 = vpop.permute.xlu0 %786
    %v789 = vmul.f32 %v780, %v787
    %v790 = vadd.f32 %v789, 0.0
    %791 = vrot.lane.b32.xlu0 %v143, 127
    %v792 = vpop.permute.xlu0 %791
    %v794 = vmul.f32 %v781, %v792
    %v795 = vadd.f32 %v784, %v794
    %796 = vrot.lane.b32.xlu0 %v143, 124
    %v797 = vpop.permute.xlu0 %796
    %v799 = vmul.f32 %v781, %v797
    %v800 = vadd.f32 %v790, %v799
    %801 = vrot.lane.b32.xlu0 %v143, 126
    %v802 = vpop.permute.xlu0 %801
    %v804 = vmul.f32 %v782, %v802
    %v805 = vadd.f32 %v795, %v804
    %806 = vrot.lane.b32.xlu0 %v143, 123
    %v807 = vpop.permute.xlu0 %806
    %v809 = vmul.f32 %v782, %v807
    %v810 = vadd.f32 %v800, %v809
    %v811 = vld [vmem:[%s11] sm:$0xff]
    %v812 = vld [vmem:[#allocation10] sm:$0xff]
    %v813 = vld [vmem:[#allocation10 + $0x8] sm:$0xff]
    %v814 = vld [vmem:[#allocation10 + $0x10] sm:$0xff]
    %v815 = vld [vmem:[#allocation10 + $0x18] sm:$0xff]
    %v816 = vld [vmem:[#allocation10 + $0x20] sm:$0xff]
    %817 = vmatprep.subr.mxu0 0.0
    %818 = vmatpush1.msra.mxu0 %v812
    %819 = vmatprep.subr.mxu0 0.0
    %820 = vmatpush1.msra.mxu0 %v813
    %821 = vmatprep.subr.mxu0 0.0
    %822 = vmatpush1.msra.mxu0 %v814
    %823 = vmatprep.subr.mxu0 0.0
    %824 = vmatpush1.msra.mxu0 %v815
    %825 = vmatprep.subr.mxu0 0.0
    %826 = vmatpush1.msra.mxu0 %v816
    %827 = vmatprep.subr.mxu0 0.0
    %828 = vmatpush1.msra.mxu0 0.0
    %829 = vmatprep.subr.mxu0 0.0
    %830 = vmatpush1.msra.mxu0 0.0
    %831 = vmatprep.subr.mxu0 0.0
    %832 = vmatpush1.msra.mxu0 0.0
    %833 = vmatprep.subr.mxu0 0.0
    %834 = vmatpush1.msra.mxu0 0.0
    %835 = vmatprep.subr.mxu0 0.0
    %836 = vmatpush1.msra.mxu0 0.0
    %837 = vmatprep.subr.mxu0 0.0
    %838 = vmatpush1.msra.mxu0 0.0
    %839 = vmatprep.subr.mxu0 0.0
    %840 = vmatpush1.msra.mxu0 0.0
    %841 = vmatprep.subr.mxu0 0.0
    %842 = vmatpush1.msra.mxu0 0.0
    %843 = vmatprep.subr.mxu0 0.0
    %844 = vmatpush1.msra.mxu0 0.0
    %845 = vmatprep.subr.mxu0 0.0
    %846 = vmatpush1.msra.mxu0 0.0
    %847 = vmatprep.subr.mxu0 0.0
    %848 = vmatpush1.msra.mxu0 0.0
    %849 = vmatprep.subr.mxu0 0.0
    %850 = vmatpush1.msra.mxu0 0.0
    %851 = vmatprep.subr.mxu0 0.0
    %852 = vmatpush1.msra.mxu0 0.0
    %853 = vmatprep.subr.mxu0 0.0
    %854 = vmatpush1.msra.mxu0 0.0
    %855 = vmatprep.subr.mxu0 0.0
    %856 = vmatpush1.msra.mxu0 0.0
    %857 = vmatprep.subr.mxu0 0.0
    %858 = vmatpush1.msra.mxu0 0.0
    %859 = vmatprep.subr.mxu0 0.0
    %860 = vmatpush1.msra.mxu0 0.0
    %861 = vmatprep.subr.mxu0 0.0
    %862 = vmatpush1.msra.mxu0 0.0
    %863 = vmatprep.subr.mxu0 0.0
    %864 = vmatpush1.msra.mxu0 0.0
    %865 = vmatprep.subr.mxu0 0.0
    %866 = vmatpush1.msra.mxu0 0.0
    %867 = vmatprep.subr.mxu0 0.0
    %868 = vmatpush1.msra.mxu0 0.0
    %869 = vmatprep.subr.mxu0 0.0
    %870 = vmatpush1.msra.mxu0 0.0
    %871 = vmatprep.subr.mxu0 0.0
    %872 = vmatpush1.msra.mxu0 0.0
    %873 = vmatprep.subr.mxu0 0.0
    %874 = vmatpush1.msra.mxu0 0.0
    %875 = vmatprep.subr.mxu0 0.0
    %876 = vmatpush1.msra.mxu0 0.0
    %877 = vmatprep.subr.mxu0 0.0
    %878 = vmatpush1.msra.mxu0 0.0
    %879 = vmatprep.subr.mxu0 0.0
    %880 = vmatpush1.msra.mxu0 0.0
    %881 = vmatprep.mubr.f32.mxu0 0.0
    %882 = vmatmul.mubr.f32.gmra.mrb[0].mxu0 %v151
    %v883 = vpop.f32.mrb[0].mxu0
    %v884 = vadd.f32 0.0, %v883
    %v885 = vpop.f32.mrb[0].mxu0
    %886 = vdwg.mxu0
    %v887 = vld [vmem:[#allocation6] sm:$0xff]
    %s888 = scalar_lea.vmem [#allocation6], 8
    %v889 = vld [vmem:[%s888] sm:$0xff]
    %s890 = scalar_lea.vmem [#allocation6], 16
    %v891 = vld [vmem:[%s890] sm:$0xff]
    %s892 = scalar_lea.vmem [#allocation6], 24
    %v893 = vld [vmem:[%s892] sm:$0xff]
    %s894 = scalar_lea.vmem [#allocation6], 32
    %v895 = vld [vmem:[%s894] sm:$0xff]
    %v896 = vsel %vm228, %v887, 0.0
    %897 = vadd.xlane.f32.xlu0 %v896
    %v898 = vpop.xlane.xlu0 %897
    %v899 = vsel %vm228, %v889, 0.0
    %900 = vadd.xlane.f32.xlu0 %v899
    %v901 = vpop.xlane.xlu0 %900
    %v902 = vsel %vm228, %v891, 0.0
    %903 = vadd.xlane.f32.xlu0 %v902
    %v904 = vpop.xlane.xlu0 %903
    %v905 = vsel %vm228, %v893, 0.0
    %906 = vadd.xlane.f32.xlu0 %v905
    %v907 = vpop.xlane.xlu0 %906
    %v908 = vsel %vm228, %v895, 0.0
    %909 = vadd.xlane.f32.xlu0 %v908
    %v910 = vpop.xlane.xlu0 %909
    %v911 = vadd.f32 %v138, %v898
    %v912 = vadd.f32 %v138, %v901
    %v913 = vadd.f32 %v138, %v904
    %v914 = vadd.f32 %v138, %v907
    %v915 = vadd.f32 %v138, %v910
    %v916 = vmul.f32 %v911, 0.020833334
    %v917 = vmul.f32 %v912, 0.020833334
    %v918 = vmul.f32 %v913, 0.020833334
    %v919 = vmul.f32 %v914, 0.020833334
    %v920 = vmul.f32 %v915, 0.020833334
    %v921 = vmul.f32 %v887, %v887
    %v922 = vmul.f32 %v889, %v889
    %v923 = vmul.f32 %v891, %v891
    %v924 = vmul.f32 %v893, %v893
    %v925 = vmul.f32 %v895, %v895
    %v926 = vsel %vm228, %v921, 0.0
    %927 = vadd.xlane.f32.xlu0 %v926
    %v928 = vpop.xlane.xlu0 %927
    %v929 = vsel %vm228, %v922, 0.0
    %930 = vadd.xlane.f32.xlu0 %v929
    %v931 = vpop.xlane.xlu0 %930
    %v932 = vsel %vm228, %v923, 0.0
    %933 = vadd.xlane.f32.xlu0 %v932
    %v934 = vpop.xlane.xlu0 %933
    %v935 = vsel %vm228, %v924, 0.0
    %936 = vadd.xlane.f32.xlu0 %v935
    %v937 = vpop.xlane.xlu0 %936
    %v938 = vsel %vm228, %v925, 0.0
    %939 = vadd.xlane.f32.xlu0 %v938
    %v940 = vpop.xlane.xlu0 %939
    %v941 = vadd.f32 %v142, %v928
    %v942 = vadd.f32 %v142, %v931
    %v943 = vadd.f32 %v142, %v934
    %v944 = vadd.f32 %v142, %v937
    %v945 = vadd.f32 %v142, %v940
    %v946 = vmul.f32 %v941, 0.020833334
    %v947 = vmul.f32 %v942, 0.020833334
    %v948 = vmul.f32 %v943, 0.020833334
    %v949 = vmul.f32 %v944, 0.020833334
    %v950 = vmul.f32 %v945, 0.020833334
    %v951 = vmul.f32 %v916, %v916
    %v952 = vmul.f32 %v917, %v917
    %v953 = vmul.f32 %v918, %v918
    %v954 = vmul.f32 %v919, %v919
    %v955 = vmul.f32 %v920, %v920
    %v956 = vsub.f32 %v946, %v951
    %v957 = vsub.f32 %v947, %v952
    %v958 = vsub.f32 %v948, %v953
    %v959 = vsub.f32 %v949, %v954
    %v960 = vsub.f32 %v950, %v955
    %v961 = vmax.f32 %v956, 0.0
    %v962 = vmax.f32 %v957, 0.0
    %v963 = vmax.f32 %v958, 0.0
    %v964 = vmax.f32 %v959, 0.0
    %v965 = vmax.f32 %v960, 0.0
    %v966 = vadd.f32 %v961, 1e-05
    %v967 = vadd.f32 %v962, 1e-05
    %v968 = vadd.f32 %v963, 1e-05
    %v969 = vadd.f32 %v964, 1e-05
    %v970 = vadd.f32 %v965, 1e-05
    %v971 = vrsqrt.pop %v966
    %v972 = vrsqrt.pop %v967
    %v973 = vrsqrt.pop %v968
    %v974 = vrsqrt.pop %v969
    %v975 = vrsqrt.pop %v970
    %v976 = vld [vmem:[%s9] sm:$0xff]
    %v978 = vsel %vm228, %v887, 0
    %v981 = vsel %vm228, %v889, 0
    %v984 = vsel %vm228, %v891, 0
    %v987 = vsel %vm228, %v893, 0
    %v990 = vsel %vm228, %v895, 0
    %992 = vmatprep.subr.mxu0 0.0
    %993 = vmatpush1.msra.mxu0 %v976
    %994 = vmatprep.subr.mxu0 0.0
    %995 = vmatpush1.msra.mxu0 0.0
    %996 = vmatprep.subr.mxu0 0.0
    %997 = vmatpush1.msra.mxu0 0.0
    %998 = vmatprep.subr.mxu0 0.0
    %999 = vmatpush1.msra.mxu0 0.0
    %1000 = vmatprep.subr.mxu0 0.0
    %1001 = vmatpush1.msra.mxu0 0.0
    %1002 = vmatprep.subr.mxu0 0.0
    %1003 = vmatpush1.msra.mxu0 0.0
    %1004 = vmatprep.subr.mxu0 0.0
    %1005 = vmatpush1.msra.mxu0 0.0
    %1006 = vmatprep.subr.mxu0 0.0
    %1007 = vmatpush1.msra.mxu0 0.0
    %1008 = vmatprep.subr.mxu0 0.0
    %1009 = vmatpush1.msra.mxu0 0.0
    %1010 = vmatprep.subr.mxu0 0.0
    %1011 = vmatpush1.msra.mxu0 0.0
    %1012 = vmatprep.subr.mxu0 0.0
    %1013 = vmatpush1.msra.mxu0 0.0
    %1014 = vmatprep.subr.mxu0 0.0
    %1015 = vmatpush1.msra.mxu0 0.0
    %1016 = vmatprep.subr.mxu0 0.0
    %1017 = vmatpush1.msra.mxu0 0.0
    %1018 = vmatprep.subr.mxu0 0.0
    %1019 = vmatpush1.msra.mxu0 0.0
    %1020 = vmatprep.subr.mxu0 0.0
    %1021 = vmatpush1.msra.mxu0 0.0
    %1022 = vmatprep.subr.mxu0 0.0
    %1023 = vmatpush1.msra.mxu0 0.0
    %1024 = vmatprep.subr.mxu0 0.0
    %1025 = vmatpush1.msra.mxu0 0.0
    %1026 = vmatprep.subr.mxu0 0.0
    %1027 = vmatpush1.msra.mxu0 0.0
    %1028 = vmatprep.subr.mxu0 0.0
    %1029 = vmatpush1.msra.mxu0 0.0
    %1030 = vmatprep.subr.mxu0 0.0
    %1031 = vmatpush1.msra.mxu0 0.0
    %1032 = vmatprep.subr.mxu0 0.0
    %1033 = vmatpush1.msra.mxu0 0.0
    %1034 = vmatprep.subr.mxu0 0.0
    %1035 = vmatpush1.msra.mxu0 0.0
    %1036 = vmatprep.subr.mxu0 0.0
    %1037 = vmatpush1.msra.mxu0 0.0
    %1038 = vmatprep.subr.mxu0 0.0
    %1039 = vmatpush1.msra.mxu0 0.0
    %1040 = vmatprep.subr.mxu0 0.0
    %1041 = vmatpush1.msra.mxu0 0.0
    %1042 = vmatprep.subr.mxu0 0.0
    %1043 = vmatpush1.msra.mxu0 0.0
    %1044 = vmatprep.subr.mxu0 0.0
    %1045 = vmatpush1.msra.mxu0 0.0
    %1046 = vmatprep.subr.mxu0 0.0
    %1047 = vmatpush1.msra.mxu0 0.0
    %1048 = vmatprep.subr.mxu0 0.0
    %1049 = vmatpush1.msra.mxu0 0.0
    %1050 = vmatprep.subr.mxu0 0.0
    %1051 = vmatpush1.msra.mxu0 0.0
    %1052 = vmatprep.subr.mxu0 0.0
    %1053 = vmatpush1.msra.mxu0 0.0
    %1054 = vmatprep.subr.mxu0 0.0
    %1055 = vmatpush1.msra.mxu0 0.0
    %1056 = vmatprep.mubr.f32.mxu0 0.0
    %1057 = vmatmul.mubr.f32.gmra.mrb[0].mxu0 %v978
    %v1058 = vpop.f32.mrb[0].mxu0
    %v1059 = vadd.f32 0.0, %v1058
    %v1060 = vpop.f32.mrb[0].mxu0
    %1061 = vmatprep.mubr.f32.mxu0 0.0
    %1062 = vmatmul.mubr.f32.gmra.mrb[0].mxu0 %v981
    %v1063 = vpop.f32.mrb[0].mxu0
    %v1064 = vadd.f32 0.0, %v1063
    %v1065 = vpop.f32.mrb[0].mxu0
    %1066 = vmatprep.mubr.f32.mxu0 0.0
    %1067 = vmatmul.mubr.f32.gmra.mrb[0].mxu0 %v984
    %v1068 = vpop.f32.mrb[0].mxu0
    %v1069 = vadd.f32 0.0, %v1068
    %v1070 = vpop.f32.mrb[0].mxu0
    %1071 = vmatprep.mubr.f32.mxu0 0.0
    %1072 = vmatmul.mubr.f32.gmra.mrb[0].mxu0 %v987
    %v1073 = vpop.f32.mrb[0].mxu0
    %v1074 = vadd.f32 0.0, %v1073
    %v1075 = vpop.f32.mrb[0].mxu0
    %1076 = vmatprep.mubr.f32.mxu0 0.0
    %1077 = vmatmul.mubr.f32.gmra.mrb[0].mxu0 %v990
    %v1078 = vpop.f32.mrb[0].mxu0
    %v1079 = vadd.f32 0.0, %v1078
    %v1080 = vpop.f32.mrb[0].mxu0
    %1081 = vdwg.mxu0
    %v1082 = vadd.f32 %v884, %v1059
    %v1083 = vadd.f32 %v884, %v1064
    %v1084 = vadd.f32 %v884, %v1069
    %v1085 = vadd.f32 %v884, %v1074
    %v1086 = vadd.f32 %v884, %v1079
    %1088 = vset.pattern.permute.xlu0 0
    %1089 = vperm.xlu0 %1088, %v971
    %v1090 = vpop.permute.xlu0 %1089
    %1093 = vset.pattern.permute.xlu0 0
    %1094 = vperm.xlu0 %1093, %v972
    %v1095 = vpop.permute.xlu0 %1094
    %1098 = vset.pattern.permute.xlu0 0
    %1099 = vperm.xlu0 %1098, %v973
    %v1100 = vpop.permute.xlu0 %1099
    %1103 = vset.pattern.permute.xlu0 0
    %1104 = vperm.xlu0 %1103, %v974
    %v1105 = vpop.permute.xlu0 %1104
    %1108 = vset.pattern.permute.xlu0 0
    %1109 = vperm.xlu0 %1108, %v975
    %v1110 = vpop.permute.xlu0 %1109
    %v1112 = vmul.f32 %v1090, %v1082
    %v1113 = vmul.f32 %v1095, %v1083
    %v1114 = vmul.f32 %v1100, %v1084
    %v1115 = vmul.f32 %v1105, %v1085
    %v1116 = vmul.f32 %v1110, %v1086
    %v1117 = vmul.f32 %v971, %v916
    %v1118 = vmul.f32 %v972, %v917
    %v1119 = vmul.f32 %v973, %v918
    %v1120 = vmul.f32 %v974, %v919
    %v1121 = vmul.f32 %v975, %v920
    %1123 = vset.pattern.permute.xlu0 0
    %1124 = vperm.xlu0 %1123, %v1117
    %v1125 = vpop.permute.xlu0 %1124
    %1128 = vset.pattern.permute.xlu0 0
    %1129 = vperm.xlu0 %1128, %v1118
    %v1130 = vpop.permute.xlu0 %1129
    %1133 = vset.pattern.permute.xlu0 0
    %1134 = vperm.xlu0 %1133, %v1119
    %v1135 = vpop.permute.xlu0 %1134
    %1138 = vset.pattern.permute.xlu0 0
    %1139 = vperm.xlu0 %1138, %v1120
    %v1140 = vpop.permute.xlu0 %1139
    %1143 = vset.pattern.permute.xlu0 0
    %1144 = vperm.xlu0 %1143, %v1121
    %v1145 = vpop.permute.xlu0 %1144
    %v1147 = vlaneseq
    %v1148 = vshrl.u32 %v1147, 7
    %v1149 = vsub.s32 0, %v1148
    %v1150 = vrot.slane %v811, %v1149
    %v1151 = vmul.f32 %v1125, %v1150
    %v1152 = vmul.f32 %v1130, %v1150
    %v1153 = vmul.f32 %v1135, %v1150
    %v1154 = vmul.f32 %v1140, %v1150
    %v1155 = vmul.f32 %v1145, %v1150
    %v1156 = vsub.f32 %v1112, %v1151
    %v1157 = vsub.f32 %v1113, %v1152
    %v1158 = vsub.f32 %v1114, %v1153
    %v1159 = vsub.f32 %v1115, %v1154
    %v1160 = vsub.f32 %v1116, %v1155
    %v1161 = vlaneseq
    %v1162 = vshrl.u32 %v1161, 7
    %v1163 = vsub.s32 1, %v1162
    %v1164 = vrot.slane %v811, %v1163
    %v1165 = vadd.f32 %v1156, %v1164
    %v1166 = vadd.f32 %v1157, %v1164
    %v1167 = vadd.f32 %v1158, %v1164
    %v1168 = vadd.f32 %v1159, %v1164
    %v1169 = vadd.f32 %v1160, %v1164
    %v1170 = vmul.f32 %v1165, 0.5
    %v1171 = vmul.f32 %v1166, 0.5
    %v1172 = vmul.f32 %v1167, 0.5
    %v1173 = vmul.f32 %v1168, 0.5
    %v1174 = vmul.f32 %v1169, 0.5
    %v1175 = vmul.f32 %v1165, 0.70710677
    %v1176 = vmul.f32 %v1166, 0.70710677
    %v1177 = vmul.f32 %v1167, 0.70710677
    %v1178 = vmul.f32 %v1168, 0.70710677
    %v1179 = vmul.f32 %v1169, 0.70710677
    %v1180 = vand.u32 2147483647, %v1175
    %v1181 = vand.u32 2147483647, %v1176
    %v1182 = vand.u32 2147483647, %v1177
    %v1183 = vand.u32 2147483647, %v1178
    %v1184 = vand.u32 2147483647, %v1179
    %v1185 = vmul.f32 %v1180, 0.3275911
    %v1186 = vmul.f32 %v1181, 0.3275911
    %v1187 = vmul.f32 %v1182, 0.3275911
    %v1188 = vmul.f32 %v1183, 0.3275911
    %v1189 = vmul.f32 %v1184, 0.3275911
    %v1190 = vadd.f32 %v1185, 1.0
    %v1191 = vadd.f32 %v1186, 1.0
    %v1192 = vadd.f32 %v1187, 1.0
    %v1193 = vadd.f32 %v1188, 1.0
    %v1194 = vadd.f32 %v1189, 1.0
    %v1195 = vrcp.pop %v1190
    %v1196 = vrcp.pop %v1191
    %v1197 = vrcp.pop %v1192
    %v1198 = vrcp.pop %v1193
    %v1199 = vrcp.pop %v1194
    %v1200 = vmul.f32 %v1195, 1.0614054
    %v1201 = vmul.f32 %v1196, 1.0614054
    %v1202 = vmul.f32 %v1197, 1.0614054
    %v1203 = vmul.f32 %v1198, 1.0614054
    %v1204 = vmul.f32 %v1199, 1.0614054
    %v1205 = vadd.f32 %v1200, -1.4531521
    %v1206 = vadd.f32 %v1201, -1.4531521
    %v1207 = vadd.f32 %v1202, -1.4531521
    %v1208 = vadd.f32 %v1203, -1.4531521
    %v1209 = vadd.f32 %v1204, -1.4531521
    %v1210 = vmul.f32 %v1205, %v1195
    %v1211 = vmul.f32 %v1206, %v1196
    %v1212 = vmul.f32 %v1207, %v1197
    %v1213 = vmul.f32 %v1208, %v1198
    %v1214 = vmul.f32 %v1209, %v1199
    %v1215 = vadd.f32 %v1210, 1.4214138
    %v1216 = vadd.f32 %v1211, 1.4214138
    %v1217 = vadd.f32 %v1212, 1.4214138
    %v1218 = vadd.f32 %v1213, 1.4214138
    %v1219 = vadd.f32 %v1214, 1.4214138
    %v1220 = vmul.f32 %v1215, %v1195
    %v1221 = vmul.f32 %v1216, %v1196
    %v1222 = vmul.f32 %v1217, %v1197
    %v1223 = vmul.f32 %v1218, %v1198
    %v1224 = vmul.f32 %v1219, %v1199
    %v1225 = vadd.f32 %v1220, -0.28449672
    %v1226 = vadd.f32 %v1221, -0.28449672
    %v1227 = vadd.f32 %v1222, -0.28449672
    %v1228 = vadd.f32 %v1223, -0.28449672
    %v1229 = vadd.f32 %v1224, -0.28449672
    %v1230 = vmul.f32 %v1225, %v1195
    %v1231 = vmul.f32 %v1226, %v1196
    %v1232 = vmul.f32 %v1227, %v1197
    %v1233 = vmul.f32 %v1228, %v1198
    %v1234 = vmul.f32 %v1229, %v1199
    %v1235 = vadd.f32 %v1230, 0.2548296
    %v1236 = vadd.f32 %v1231, 0.2548296
    %v1237 = vadd.f32 %v1232, 0.2548296
    %v1238 = vadd.f32 %v1233, 0.2548296
    %v1239 = vadd.f32 %v1234, 0.2548296
    %v1240 = vmul.f32 %v1235, %v1195
    %v1241 = vmul.f32 %v1236, %v1196
    %v1242 = vmul.f32 %v1237, %v1197
    %v1243 = vmul.f32 %v1238, %v1198
    %v1244 = vmul.f32 %v1239, %v1199
    %v1245 = vsub.f32 0.0, %v1180
    %v1246 = vsub.f32 0.0, %v1181
    %v1247 = vsub.f32 0.0, %v1182
    %v1248 = vsub.f32 0.0, %v1183
    %v1249 = vsub.f32 0.0, %v1184
    %v1250 = vmul.f32 %v1245, %v1180
    %v1251 = vmul.f32 %v1246, %v1181
    %v1252 = vmul.f32 %v1247, %v1182
    %v1253 = vmul.f32 %v1248, %v1183
    %v1254 = vmul.f32 %v1249, %v1184
    %v1255 = vmul.f32 %v1250, 1.442695
    %v1256 = vpow.pop %v1255
    %v1257 = vmul.f32 %v1251, 1.442695
    %v1258 = vpow.pop %v1257
    %v1259 = vmul.f32 %v1252, 1.442695
    %v1260 = vpow.pop %v1259
    %v1261 = vmul.f32 %v1253, 1.442695
    %v1262 = vpow.pop %v1261
    %v1263 = vmul.f32 %v1254, 1.442695
    %v1264 = vpow.pop %v1263
    %v1265 = vmul.f32 %v1240, %v1256
    %v1266 = vmul.f32 %v1241, %v1258
    %v1267 = vmul.f32 %v1242, %v1260
    %v1268 = vmul.f32 %v1243, %v1262
    %v1269 = vmul.f32 %v1244, %v1264
    %v1270 = vsub.f32 1.0, %v1265
    %v1271 = vsub.f32 1.0, %v1266
    %v1272 = vsub.f32 1.0, %v1267
    %v1273 = vsub.f32 1.0, %v1268
    %v1274 = vsub.f32 1.0, %v1269
    %vm1275 = vcmp.ge.f32.partialorder %v1175, 0.0
    %vm1276 = vcmp.ge.f32.partialorder %v1176, 0.0
    %vm1277 = vcmp.ge.f32.partialorder %v1177, 0.0
    %vm1278 = vcmp.ge.f32.partialorder %v1178, 0.0
    %vm1279 = vcmp.ge.f32.partialorder %v1179, 0.0
    %v1280 = vsub.f32 0.0, %v1270
    %v1281 = vsub.f32 0.0, %v1271
    %v1282 = vsub.f32 0.0, %v1272
    %v1283 = vsub.f32 0.0, %v1273
    %v1284 = vsub.f32 0.0, %v1274
    %v1285 = vsel %vm1275, %v1270, %v1280
    %v1286 = vsel %vm1276, %v1271, %v1281
    %v1287 = vsel %vm1277, %v1272, %v1282
    %v1288 = vsel %vm1278, %v1273, %v1283
    %v1289 = vsel %vm1279, %v1274, %v1284
    %v1290 = vadd.f32 %v1285, 1.0
    %v1291 = vadd.f32 %v1286, 1.0
    %v1292 = vadd.f32 %v1287, 1.0
    %v1293 = vadd.f32 %v1288, 1.0
    %v1294 = vadd.f32 %v1289, 1.0
    %v1295 = vmul.f32 %v1170, %v1290
    %v1296 = vmul.f32 %v1171, %v1291
    %v1297 = vmul.f32 %v1172, %v1292
    %v1298 = vmul.f32 %v1173, %v1293
    %v1299 = vmul.f32 %v1174, %v1294
    %v1300 = vsel %vm501, %v1295, 0.0
    %1301 = vadd.xlane.f32.xlu0 %v1300
    %v1302 = vpop.xlane.xlu0 %1301
    %v1303 = vsel %vm501, %v1296, 0.0
    %1304 = vadd.xlane.f32.xlu0 %v1303
    %v1305 = vpop.xlane.xlu0 %1304
    %v1306 = vsel %vm501, %v1297, 0.0
    %1307 = vadd.xlane.f32.xlu0 %v1306
    %v1308 = vpop.xlane.xlu0 %1307
    %v1309 = vsel %vm501, %v1298, 0.0
    %1310 = vadd.xlane.f32.xlu0 %v1309
    %v1311 = vpop.xlane.xlu0 %1310
    %v1312 = vsel %vm501, %v1299, 0.0
    %1313 = vadd.xlane.f32.xlu0 %v1312
    %v1314 = vpop.xlane.xlu0 %1313
    %v1315 = vmul.f32 %v1302, %v511
    %v1316 = vmul.f32 %v1305, %v511
    %v1317 = vmul.f32 %v1308, %v511
    %v1318 = vmul.f32 %v1311, %v511
    %v1319 = vmul.f32 %v1314, %v511
    %v1320 = vsub.f32 %v1295, %v1315
    %v1321 = vsub.f32 %v1296, %v1316
    %v1322 = vsub.f32 %v1297, %v1317
    %v1323 = vsub.f32 %v1298, %v1318
    %v1324 = vsub.f32 %v1299, %v1319
    %v1325 = vmul.f32 %v1320, %v1320
    %v1326 = vmul.f32 %v1321, %v1321
    %v1327 = vmul.f32 %v1322, %v1322
    %v1328 = vmul.f32 %v1323, %v1323
    %v1329 = vmul.f32 %v1324, %v1324
    %v1330 = vsel %vm501, %v1325, 0.0
    %1331 = vadd.xlane.f32.xlu0 %v1330
    %v1332 = vpop.xlane.xlu0 %1331
    %v1333 = vsel %vm501, %v1326, 0.0
    %1334 = vadd.xlane.f32.xlu0 %v1333
    %v1335 = vpop.xlane.xlu0 %1334
    %v1336 = vsel %vm501, %v1327, 0.0
    %1337 = vadd.xlane.f32.xlu0 %v1336
    %v1338 = vpop.xlane.xlu0 %1337
    %v1339 = vsel %vm501, %v1328, 0.0
    %1340 = vadd.xlane.f32.xlu0 %v1339
    %v1341 = vpop.xlane.xlu0 %1340
    %v1342 = vsel %vm501, %v1329, 0.0
    %1343 = vadd.xlane.f32.xlu0 %v1342
    %v1344 = vpop.xlane.xlu0 %1343
    %v1345 = vmul.f32 %v1332, %v511
    %v1346 = vmul.f32 %v1335, %v511
    %v1347 = vmul.f32 %v1338, %v511
    %v1348 = vmul.f32 %v1341, %v511
    %v1349 = vmul.f32 %v1344, %v511
    %v1350 = vadd.f32 %v1345, 1e-05
    %v1351 = vadd.f32 %v1346, 1e-05
    %v1352 = vadd.f32 %v1347, 1e-05
    %v1353 = vadd.f32 %v1348, 1e-05
    %v1354 = vadd.f32 %v1349, 1e-05
    %v1355 = vrsqrt.pop %v1350
    %v1356 = vrsqrt.pop %v1351
    %v1357 = vrsqrt.pop %v1352
    %v1358 = vrsqrt.pop %v1353
    %v1359 = vrsqrt.pop %v1354
    %v1360 = vmul.f32 %v1320, %v1355
    %v1361 = vmul.f32 %v1321, %v1356
    %v1362 = vmul.f32 %v1322, %v1357
    %v1363 = vmul.f32 %v1323, %v1358
    %v1364 = vmul.f32 %v1324, %v1359
    %v1365 = vld [vmem:[#allocation12] sm:$0xff]
    %v1366 = vld [vmem:[#allocation12 + $0x8] sm:$0xff]
    %v1367 = vld [vmem:[#allocation12 + $0x10] sm:$0xff]
    %v1368 = vld [vmem:[#allocation12 + $0x18] sm:$0xff]
    %v1369 = vld [vmem:[#allocation12 + $0x20] sm:$0xff]
    %v1370 = vld [vmem:[#allocation12 + $0x28] sm:$0xff]
    %v1371 = vld [vmem:[#allocation12 + $0x30] sm:$0xff]
    %v1372 = vld [vmem:[#allocation12 + $0x38] sm:$0xff]
    %v1373 = vlaneseq
    %v1374 = vshrl.u32 %v1373, 7
    %v1375 = vsub.s32 2, %v1374
    %v1376 = vrot.slane %v811, %v1375
    %v1378 = vsel %vm501, %v1360, 0
    %v1381 = vsel %vm501, %v1361, 0
    %v1384 = vsel %vm501, %v1362, 0
    %v1387 = vsel %vm501, %v1363, 0
    %v1390 = vsel %vm501, %v1364, 0
    %1392 = vmatprep.subr.mxu0 0.0
    %1393 = vmatpush1.msra.mxu0 %v1365
    %1394 = vmatprep.subr.mxu0 0.0
    %1395 = vmatpush1.msra.mxu0 %v1366
    %1396 = vmatprep.subr.mxu0 0.0
    %1397 = vmatpush1.msra.mxu0 %v1367
    %1398 = vmatprep.subr.mxu0 0.0
    %1399 = vmatpush1.msra.mxu0 %v1368
    %1400 = vmatprep.subr.mxu0 0.0
    %1401 = vmatpush1.msra.mxu0 %v1369
    %1402 = vmatprep.subr.mxu0 0.0
    %1403 = vmatpush1.msra.mxu0 %v1370
    %1404 = vmatprep.subr.mxu0 0.0
    %1405 = vmatpush1.msra.mxu0 %v1371
    %1406 = vmatprep.subr.mxu0 0.0
    %1407 = vmatpush1.msra.mxu0 %v1372
    %1408 = vmatprep.subr.mxu0 0.0
    %1409 = vmatpush1.msra.mxu0 0.0
    %1410 = vmatprep.subr.mxu0 0.0
    %1411 = vmatpush1.msra.mxu0 0.0
    %1412 = vmatprep.subr.mxu0 0.0
    %1413 = vmatpush1.msra.mxu0 0.0
    %1414 = vmatprep.subr.mxu0 0.0
    %1415 = vmatpush1.msra.mxu0 0.0
    %1416 = vmatprep.subr.mxu0 0.0
    %1417 = vmatpush1.msra.mxu0 0.0
    %1418 = vmatprep.subr.mxu0 0.0
    %1419 = vmatpush1.msra.mxu0 0.0
    %1420 = vmatprep.subr.mxu0 0.0
    %1421 = vmatpush1.msra.mxu0 0.0
    %1422 = vmatprep.subr.mxu0 0.0
    %1423 = vmatpush1.msra.mxu0 0.0
    %1424 = vmatprep.subr.mxu0 0.0
    %1425 = vmatpush1.msra.mxu0 0.0
    %1426 = vmatprep.subr.mxu0 0.0
    %1427 = vmatpush1.msra.mxu0 0.0
    %1428 = vmatprep.subr.mxu0 0.0
    %1429 = vmatpush1.msra.mxu0 0.0
    %1430 = vmatprep.subr.mxu0 0.0
    %1431 = vmatpush1.msra.mxu0 0.0
    %1432 = vmatprep.subr.mxu0 0.0
    %1433 = vmatpush1.msra.mxu0 0.0
    %1434 = vmatprep.subr.mxu0 0.0
    %1435 = vmatpush1.msra.mxu0 0.0
    %1436 = vmatprep.subr.mxu0 0.0
    %1437 = vmatpush1.msra.mxu0 0.0
    %1438 = vmatprep.subr.mxu0 0.0
    %1439 = vmatpush1.msra.mxu0 0.0
    %1440 = vmatprep.subr.mxu0 0.0
    %1441 = vmatpush1.msra.mxu0 0.0
    %1442 = vmatprep.subr.mxu0 0.0
    %1443 = vmatpush1.msra.mxu0 0.0
    %1444 = vmatprep.subr.mxu0 0.0
    %1445 = vmatpush1.msra.mxu0 0.0
    %1446 = vmatprep.subr.mxu0 0.0
    %1447 = vmatpush1.msra.mxu0 0.0
    %1448 = vmatprep.subr.mxu0 0.0
    %1449 = vmatpush1.msra.mxu0 0.0
    %1450 = vmatprep.subr.mxu0 0.0
    %1451 = vmatpush1.msra.mxu0 0.0
    %1452 = vmatprep.subr.mxu0 0.0
    %1453 = vmatpush1.msra.mxu0 0.0
    %1454 = vmatprep.subr.mxu0 0.0
    %1455 = vmatpush1.msra.mxu0 0.0
    %1456 = vmatprep.mubr.f32.mxu0 0.0
    %1457 = vmatmul.mubr.f32.gmra.mrb[0].mxu0 %v1378
    %v1458 = vpop.f32.mrb[0].mxu0
    %v1459 = vadd.f32 %v1376, %v1458
    %v1460 = vpop.f32.mrb[0].mxu0
    %1461 = vmatprep.mubr.f32.mxu0 0.0
    %1462 = vmatmul.mubr.f32.gmra.mrb[0].mxu0 %v1381
    %v1463 = vpop.f32.mrb[0].mxu0
    %v1464 = vadd.f32 %v1376, %v1463
    %v1465 = vpop.f32.mrb[0].mxu0
    %1466 = vmatprep.mubr.f32.mxu0 0.0
    %1467 = vmatmul.mubr.f32.gmra.mrb[0].mxu0 %v1384
    %v1468 = vpop.f32.mrb[0].mxu0
    %v1469 = vadd.f32 %v1376, %v1468
    %v1470 = vpop.f32.mrb[0].mxu0
    %1471 = vmatprep.mubr.f32.mxu0 0.0
    %1472 = vmatmul.mubr.f32.gmra.mrb[0].mxu0 %v1387
    %v1473 = vpop.f32.mrb[0].mxu0
    %v1474 = vadd.f32 %v1376, %v1473
    %v1475 = vpop.f32.mrb[0].mxu0
    %1476 = vmatprep.mubr.f32.mxu0 0.0
    %1477 = vmatmul.mubr.f32.gmra.mrb[0].mxu0 %v1390
    %v1478 = vpop.f32.mrb[0].mxu0
    %v1479 = vadd.f32 %v1376, %v1478
    %v1480 = vpop.f32.mrb[0].mxu0
    %1481 = vdwg.mxu0
    %v1482 = vmul.f32 %v1459, 0.5
    %v1483 = vmul.f32 %v1464, 0.5
    %v1484 = vmul.f32 %v1469, 0.5
    %v1485 = vmul.f32 %v1474, 0.5
    %v1486 = vmul.f32 %v1479, 0.5
    %v1487 = vmul.f32 %v1459, 0.70710677
    %v1488 = vmul.f32 %v1464, 0.70710677
    %v1489 = vmul.f32 %v1469, 0.70710677
    %v1490 = vmul.f32 %v1474, 0.70710677
    %v1491 = vmul.f32 %v1479, 0.70710677
    %v1492 = vand.u32 2147483647, %v1487
    %v1493 = vand.u32 2147483647, %v1488
    %v1494 = vand.u32 2147483647, %v1489
    %v1495 = vand.u32 2147483647, %v1490
    %v1496 = vand.u32 2147483647, %v1491
    %v1497 = vmul.f32 %v1492, 0.3275911
    %v1498 = vmul.f32 %v1493, 0.3275911
    %v1499 = vmul.f32 %v1494, 0.3275911
    %v1500 = vmul.f32 %v1495, 0.3275911
    %v1501 = vmul.f32 %v1496, 0.3275911
    %v1502 = vadd.f32 %v1497, 1.0
    %v1503 = vadd.f32 %v1498, 1.0
    %v1504 = vadd.f32 %v1499, 1.0
    %v1505 = vadd.f32 %v1500, 1.0
    %v1506 = vadd.f32 %v1501, 1.0
    %v1507 = vrcp.pop %v1502
    %v1508 = vrcp.pop %v1503
    %v1509 = vrcp.pop %v1504
    %v1510 = vrcp.pop %v1505
    %v1511 = vrcp.pop %v1506
    %v1512 = vmul.f32 %v1507, 1.0614054
    %v1513 = vmul.f32 %v1508, 1.0614054
    %v1514 = vmul.f32 %v1509, 1.0614054
    %v1515 = vmul.f32 %v1510, 1.0614054
    %v1516 = vmul.f32 %v1511, 1.0614054
    %v1517 = vadd.f32 %v1512, -1.4531521
    %v1518 = vadd.f32 %v1513, -1.4531521
    %v1519 = vadd.f32 %v1514, -1.4531521
    %v1520 = vadd.f32 %v1515, -1.4531521
    %v1521 = vadd.f32 %v1516, -1.4531521
    %v1522 = vmul.f32 %v1517, %v1507
    %v1523 = vmul.f32 %v1518, %v1508
    %v1524 = vmul.f32 %v1519, %v1509
    %v1525 = vmul.f32 %v1520, %v1510
    %v1526 = vmul.f32 %v1521, %v1511
    %v1527 = vadd.f32 %v1522, 1.4214138
    %v1528 = vadd.f32 %v1523, 1.4214138
    %v1529 = vadd.f32 %v1524, 1.4214138
    %v1530 = vadd.f32 %v1525, 1.4214138
    %v1531 = vadd.f32 %v1526, 1.4214138
    %v1532 = vmul.f32 %v1527, %v1507
    %v1533 = vmul.f32 %v1528, %v1508
    %v1534 = vmul.f32 %v1529, %v1509
    %v1535 = vmul.f32 %v1530, %v1510
    %v1536 = vmul.f32 %v1531, %v1511
    %v1537 = vadd.f32 %v1532, -0.28449672
    %v1538 = vadd.f32 %v1533, -0.28449672
    %v1539 = vadd.f32 %v1534, -0.28449672
    %v1540 = vadd.f32 %v1535, -0.28449672
    %v1541 = vadd.f32 %v1536, -0.28449672
    %v1542 = vmul.f32 %v1537, %v1507
    %v1543 = vmul.f32 %v1538, %v1508
    %v1544 = vmul.f32 %v1539, %v1509
    %v1545 = vmul.f32 %v1540, %v1510
    %v1546 = vmul.f32 %v1541, %v1511
    %v1547 = vadd.f32 %v1542, 0.2548296
    %v1548 = vadd.f32 %v1543, 0.2548296
    %v1549 = vadd.f32 %v1544, 0.2548296
    %v1550 = vadd.f32 %v1545, 0.2548296
    %v1551 = vadd.f32 %v1546, 0.2548296
    %v1552 = vmul.f32 %v1547, %v1507
    %v1553 = vmul.f32 %v1548, %v1508
    %v1554 = vmul.f32 %v1549, %v1509
    %v1555 = vmul.f32 %v1550, %v1510
    %v1556 = vmul.f32 %v1551, %v1511
    %v1557 = vsub.f32 0.0, %v1492
    %v1558 = vsub.f32 0.0, %v1493
    %v1559 = vsub.f32 0.0, %v1494
    %v1560 = vsub.f32 0.0, %v1495
    %v1561 = vsub.f32 0.0, %v1496
    %v1562 = vmul.f32 %v1557, %v1492
    %v1563 = vmul.f32 %v1558, %v1493
    %v1564 = vmul.f32 %v1559, %v1494
    %v1565 = vmul.f32 %v1560, %v1495
    %v1566 = vmul.f32 %v1561, %v1496
    %v1567 = vmul.f32 %v1562, 1.442695
    %v1568 = vpow.pop %v1567
    %v1569 = vmul.f32 %v1563, 1.442695
    %v1570 = vpow.pop %v1569
    %v1571 = vmul.f32 %v1564, 1.442695
    %v1572 = vpow.pop %v1571
    %v1573 = vmul.f32 %v1565, 1.442695
    %v1574 = vpow.pop %v1573
    %v1575 = vmul.f32 %v1566, 1.442695
    %v1576 = vpow.pop %v1575
    %v1577 = vmul.f32 %v1552, %v1568
    %v1578 = vmul.f32 %v1553, %v1570
    %v1579 = vmul.f32 %v1554, %v1572
    %v1580 = vmul.f32 %v1555, %v1574
    %v1581 = vmul.f32 %v1556, %v1576
    %v1582 = vsub.f32 1.0, %v1577
    %v1583 = vsub.f32 1.0, %v1578
    %v1584 = vsub.f32 1.0, %v1579
    %v1585 = vsub.f32 1.0, %v1580
    %v1586 = vsub.f32 1.0, %v1581
    %vm1587 = vcmp.ge.f32.partialorder %v1487, 0.0
    %vm1588 = vcmp.ge.f32.partialorder %v1488, 0.0
    %vm1589 = vcmp.ge.f32.partialorder %v1489, 0.0
    %vm1590 = vcmp.ge.f32.partialorder %v1490, 0.0
    %vm1591 = vcmp.ge.f32.partialorder %v1491, 0.0
    %v1592 = vsub.f32 0.0, %v1582
    %v1593 = vsub.f32 0.0, %v1583
    %v1594 = vsub.f32 0.0, %v1584
    %v1595 = vsub.f32 0.0, %v1585
    %v1596 = vsub.f32 0.0, %v1586
    %v1597 = vsel %vm1587, %v1582, %v1592
    %v1598 = vsel %vm1588, %v1583, %v1593
    %v1599 = vsel %vm1589, %v1584, %v1594
    %v1600 = vsel %vm1590, %v1585, %v1595
    %v1601 = vsel %vm1591, %v1586, %v1596
    %v1602 = vadd.f32 %v1597, 1.0
    %v1603 = vadd.f32 %v1598, 1.0
    %v1604 = vadd.f32 %v1599, 1.0
    %v1605 = vadd.f32 %v1600, 1.0
    %v1606 = vadd.f32 %v1601, 1.0
    %v1607 = vmul.f32 %v1482, %v1602
    %v1608 = vmul.f32 %v1483, %v1603
    %v1609 = vmul.f32 %v1484, %v1604
    %v1610 = vmul.f32 %v1485, %v1605
    %v1611 = vmul.f32 %v1486, %v1606
    %v1612 = vsel %vm501, %v1607, 0.0
    %1613 = vadd.xlane.f32.xlu0 %v1612
    %v1614 = vpop.xlane.xlu0 %1613
    %v1615 = vsel %vm501, %v1608, 0.0
    %1616 = vadd.xlane.f32.xlu0 %v1615
    %v1617 = vpop.xlane.xlu0 %1616
    %v1618 = vsel %vm501, %v1609, 0.0
    %1619 = vadd.xlane.f32.xlu0 %v1618
    %v1620 = vpop.xlane.xlu0 %1619
    %v1621 = vsel %vm501, %v1610, 0.0
    %1622 = vadd.xlane.f32.xlu0 %v1621
    %v1623 = vpop.xlane.xlu0 %1622
    %v1624 = vsel %vm501, %v1611, 0.0
    %1625 = vadd.xlane.f32.xlu0 %v1624
    %v1626 = vpop.xlane.xlu0 %1625
    %v1627 = vmul.f32 %v1614, %v511
    %v1628 = vmul.f32 %v1617, %v511
    %v1629 = vmul.f32 %v1620, %v511
    %v1630 = vmul.f32 %v1623, %v511
    %v1631 = vmul.f32 %v1626, %v511
    %v1632 = vsub.f32 %v1607, %v1627
    %v1633 = vsub.f32 %v1608, %v1628
    %v1634 = vsub.f32 %v1609, %v1629
    %v1635 = vsub.f32 %v1610, %v1630
    %v1636 = vsub.f32 %v1611, %v1631
    %v1637 = vmul.f32 %v1632, %v1632
    %v1638 = vmul.f32 %v1633, %v1633
    %v1639 = vmul.f32 %v1634, %v1634
    %v1640 = vmul.f32 %v1635, %v1635
    %v1641 = vmul.f32 %v1636, %v1636
    %v1642 = vsel %vm501, %v1637, 0.0
    %1643 = vadd.xlane.f32.xlu0 %v1642
    %v1644 = vpop.xlane.xlu0 %1643
    %v1645 = vsel %vm501, %v1638, 0.0
    %1646 = vadd.xlane.f32.xlu0 %v1645
    %v1647 = vpop.xlane.xlu0 %1646
    %v1648 = vsel %vm501, %v1639, 0.0
    %1649 = vadd.xlane.f32.xlu0 %v1648
    %v1650 = vpop.xlane.xlu0 %1649
    %v1651 = vsel %vm501, %v1640, 0.0
    %1652 = vadd.xlane.f32.xlu0 %v1651
    %v1653 = vpop.xlane.xlu0 %1652
    %v1654 = vsel %vm501, %v1641, 0.0
    %1655 = vadd.xlane.f32.xlu0 %v1654
    %v1656 = vpop.xlane.xlu0 %1655
    %v1657 = vmul.f32 %v1644, %v511
    %v1658 = vmul.f32 %v1647, %v511
    %v1659 = vmul.f32 %v1650, %v511
    %v1660 = vmul.f32 %v1653, %v511
    %v1661 = vmul.f32 %v1656, %v511
    %v1662 = vadd.f32 %v1657, 1e-05
    %v1663 = vadd.f32 %v1658, 1e-05
    %v1664 = vadd.f32 %v1659, 1e-05
    %v1665 = vadd.f32 %v1660, 1e-05
    %v1666 = vadd.f32 %v1661, 1e-05
    %v1667 = vrsqrt.pop %v1662
    %v1668 = vrsqrt.pop %v1663
    %v1669 = vrsqrt.pop %v1664
    %v1670 = vrsqrt.pop %v1665
    %v1671 = vrsqrt.pop %v1666
    %v1672 = vmul.f32 %v1632, %v1667
    %v1673 = vmul.f32 %v1633, %v1668
    %v1674 = vmul.f32 %v1634, %v1669
    %v1675 = vmul.f32 %v1635, %v1670
    %v1676 = vmul.f32 %v1636, %v1671
    %v1677 = vlaneseq
    %v1678 = vshrl.u32 %v1677, 7
    %v1679 = vsub.s32 3, %v1678
    %v1680 = vrot.slane %v811, %v1679
    %v1681 = vmul.f32 %v1672, %v1680
    %v1682 = vmul.f32 %v1673, %v1680
    %v1683 = vmul.f32 %v1674, %v1680
    %v1684 = vmul.f32 %v1675, %v1680
    %v1685 = vmul.f32 %v1676, %v1680
    %v1686 = vsel %vm501, %v1681, 0.0
    %1687 = vadd.xlane.f32.xlu0 %v1686
    %v1688 = vpop.xlane.xlu0 %1687
    %v1689 = vsel %vm501, %v1682, 0.0
    %1690 = vadd.xlane.f32.xlu0 %v1689
    %v1691 = vpop.xlane.xlu0 %1690
    %v1692 = vsel %vm501, %v1683, 0.0
    %1693 = vadd.xlane.f32.xlu0 %v1692
    %v1694 = vpop.xlane.xlu0 %1693
    %v1695 = vsel %vm501, %v1684, 0.0
    %1696 = vadd.xlane.f32.xlu0 %v1695
    %v1697 = vpop.xlane.xlu0 %1696
    %v1698 = vsel %vm501, %v1685, 0.0
    %1699 = vadd.xlane.f32.xlu0 %v1698
    %v1700 = vpop.xlane.xlu0 %1699
    %v1701 = vlaneseq
    %v1702 = vshrl.u32 %v1701, 7
    %v1703 = vsub.s32 4, %v1702
    %v1704 = vrot.slane %v811, %v1703
    %v1705 = vadd.f32 %v1688, %v1704
    %v1706 = vadd.f32 %v1691, %v1704
    %v1707 = vadd.f32 %v1694, %v1704
    %v1708 = vadd.f32 %v1697, %v1704
    %v1709 = vadd.f32 %v1700, %v1704
    %1710 = vrot.lane.b32.xlu0 %v143, 122
    %v1711 = vpop.permute.xlu0 %1710
    %v1713 = vmul.f32 %v1705, %v1711
    %v1714 = vadd.f32 %v1713, 0.0
    %1715 = vrot.lane.b32.xlu0 %v143, 117
    %v1716 = vpop.permute.xlu0 %1715
    %v1718 = vmul.f32 %v1705, %v1716
    %v1719 = vadd.f32 %v1718, 0.0
    %1720 = vrot.lane.b32.xlu0 %v143, 121
    %v1721 = vpop.permute.xlu0 %1720
    %v1723 = vmul.f32 %v1706, %v1721
    %v1724 = vadd.f32 %v1714, %v1723
    %1725 = vrot.lane.b32.xlu0 %v143, 116
    %v1726 = vpop.permute.xlu0 %1725
    %v1728 = vmul.f32 %v1706, %v1726
    %v1729 = vadd.f32 %v1719, %v1728
    %1730 = vrot.lane.b32.xlu0 %v143, 120
    %v1731 = vpop.permute.xlu0 %1730
    %v1733 = vmul.f32 %v1707, %v1731
    %v1734 = vadd.f32 %v1724, %v1733
    %1735 = vrot.lane.b32.xlu0 %v143, 115
    %v1736 = vpop.permute.xlu0 %1735
    %v1738 = vmul.f32 %v1707, %v1736
    %v1739 = vadd.f32 %v1729, %v1738
    %1740 = vrot.lane.b32.xlu0 %v143, 119
    %v1741 = vpop.permute.xlu0 %1740
    %v1743 = vmul.f32 %v1708, %v1741
    %v1744 = vadd.f32 %v1734, %v1743
    %1745 = vrot.lane.b32.xlu0 %v143, 114
    %v1746 = vpop.permute.xlu0 %1745
    %v1748 = vmul.f32 %v1708, %v1746
    %v1749 = vadd.f32 %v1739, %v1748
    %1750 = vrot.lane.b32.xlu0 %v143, 118
    %v1751 = vpop.permute.xlu0 %1750
    %v1753 = vmul.f32 %v1709, %v1751
    %v1754 = vadd.f32 %v1744, %v1753
    %1755 = vrot.lane.b32.xlu0 %v143, 113
    %v1756 = vpop.permute.xlu0 %1755
    %v1758 = vmul.f32 %v1709, %v1756
    %v1759 = vadd.f32 %v1749, %v1758
    %v1760 = vadd.f32 %v805, %v1754
    %v1761 = vadd.f32 %v810, %v1759
    %1763 = vrot.lane.b32.xlu0 %v1761, 16
    %v1764 = vpop.permute.xlu0 %1763
    %v1766 = vadd.f32 %v143, %v1764
    %v1767 = vsub.f32 %v143, %v1764
    %1769 = vrot.lane.b32.xlu0 %v1760, 17
    %v1770 = vpop.permute.xlu0 %1769
    %v1772 = vadd.f32 %v143, %v1770
    %v1773 = vsub.f32 %v143, %v1770
    %1775 = vrot.lane.b32.xlu0 %v1766, 112
    %v1776 = vpop.permute.xlu0 %1775
    %1779 = vrot.lane.b32.xlu0 %v1767, 113
    %v1780 = vpop.permute.xlu0 %1779
    %1783 = vrot.lane.b32.xlu0 %v1772, 113
    %v1784 = vpop.permute.xlu0 %1783
    %1787 = vrot.lane.b32.xlu0 %v1773, 114
    %v1788 = vpop.permute.xlu0 %1787
    %vm1790 = vcmask 7168
    %v1791 = vsel %vm1790, %v1776, %v1780
    %vm1792 = vcmask 15360
    %v1793 = vsel %vm1792, %v1791, %v1784
    %vm1794 = vcmask 23552
    %v1795 = vsel %vm1794, %v1793, %v1788
    %vm1796 = vcmask 31744
    %1797 = vst.msk [vmem:[%s12] sm:$0xff] %vm1796, %v1795
    // Predicated region
    $region78: #{tpu_custom_call.1} parent=1 // pred_check
      _
    $region79: #{tpu_custom_call.1} parent=1 // pred_check_branch
      %1799 = sbr.rel (0) target = $region81
    $region80: #{tpu_custom_call.1} parent=1 // pred_region
      _
    $region81: #{tpu_custom_call.1} parent=1 // pred_fallthru
      _
    // Predicated region
    $region82: #{tpu_custom_call.1} parent=1 // pred_check
      _
    $region83: #{tpu_custom_call.1} parent=1 // pred_check_branch
      %1801 = sbr.rel (0) target = $region85
    $region84: #{tpu_custom_call.1} parent=1 // pred_region
      _
    $region85: #{tpu_custom_call.1} parent=1 // pred_fallthru
      _
    %1802 = vsyncpa [#allocation3], 1
    %1803 = vsyncpa [#allocation5], 1
    %1804 = vsyncpa [#allocation8], 1
    %1805 = vsyncpa [#allocation11], 1

</llo_original>
